<compile_context>
chip_gen: v7x
topology: tpu7x:2x2x1
jax: 0.10.0
libtpu: 0.0.40
codegen_flags: <defaults>
</compile_context>

<pallas_src>
import functools

import jax
import jax.numpy as jnp
from jax.experimental import pallas as pl
from jax.experimental.pallas import tpu as pltpu


def _sim_mlp_kernel(x_ref, w1_ref, w3_ref, w2_ref, o_ref, acc_ref, *, act_fn):
    """One (token-tile, intermediate-tile) step of the fused gated MLP.

    x_ref  : (tm, E)   token tile (resident across the reduction axis)
    w1_ref : (E, ti)   slice of W1 (x @ W1 layout)
    w3_ref : (E, ti)   slice of W3
    w2_ref : (ti, E)   slice of W2
    o_ref  : (tm, E)   output tile (resident across the reduction axis)
    acc_ref: (tm, E)   f32 accumulator scratch
    """
    j = pl.program_id(1)

    @pl.when(j == 0)
    def _():
        acc_ref[...] = jnp.zeros_like(acc_ref)

    x = x_ref[...]
    # Up / gate projections for this intermediate slice (MXU, f32 accumulate).
    h1 = jnp.dot(x, w1_ref[...], preferred_element_type=jnp.float32)
    h3 = jnp.dot(x, w3_ref[...], preferred_element_type=jnp.float32)

    if act_fn == "silu":
        g = h1 * jax.nn.sigmoid(h1)                 # exp -> EUP slot (free-ish)
    elif act_fn == "gelu":
        # nn.GELU() default is the exact (erf-based) formulation.
        g = jax.nn.gelu(h1, approximate=False)
    else:
        raise NotImplementedError(act_fn)

    gated = (g * h3).astype(w2_ref.dtype)            # ElementwiseMul equivalent
    # Down projection: accumulate this intermediate slice's contribution.
    acc_ref[...] += jnp.dot(gated, w2_ref[...], preferred_element_type=jnp.float32)

    @pl.when(j == pl.num_programs(1) - 1)
    def _():
        o_ref[...] = acc_ref[...].astype(o_ref.dtype)


def sim_mlp_forward(x, w1, w3, w2, *, act_fn="silu", tm=128, ti=256):
    """Equivalent of SimMLP.forward (mlp_bias=False path).

    x  : (T, n_embd)
    w1 : (n_embd, intermediate)   -- PyTorch w1.weight transposed
    w3 : (n_embd, intermediate)   -- PyTorch w3.weight transposed
    w2 : (intermediate, n_embd)   -- PyTorch w2.weight transposed
    returns (T, n_embd)
    """
    T, E = x.shape
    E1, I = w1.shape
    assert E1 == E and w3.shape == (E, I) and w2.shape == (I, E)

    tm = min(tm, T)
    ti = min(ti, I)
    assert T % tm == 0 and I % ti == 0, "shapes must be tile-divisible"

    grid = (T // tm, I // ti)

    kernel = functools.partial(_sim_mlp_kernel, act_fn=act_fn)

    grid_spec = pltpu.PrefetchScalarGridSpec(
        num_scalar_prefetch=0,
        grid=grid,
        in_specs=[
            pl.BlockSpec((tm, E), lambda i, j: (i, 0)),   # x token tile
            pl.BlockSpec((E, ti), lambda i, j: (0, j)),   # W1 slice
            pl.BlockSpec((E, ti), lambda i, j: (0, j)),   # W3 slice
            pl.BlockSpec((ti, E), lambda i, j: (j, 0)),   # W2 slice
        ],
        out_specs=pl.BlockSpec((tm, E), lambda i, j: (i, 0)),
        scratch_shapes=[pltpu.VMEM((tm, E), jnp.float32)],
    )

    itemsize = jnp.dtype(x.dtype).itemsize
    cost = pl.CostEstimate(
        flops=2 * T * I * E * 3 + 4 * T * I,          # 3 matmuls + gating mul/act
        transcendentals=T * I,                        # sigmoid / erf
        bytes_accessed=(T * E + 2 * E * I + I * E + T * E) * itemsize,
    )

    return pl.pallas_call(
        kernel,
        grid_spec=grid_spec,
        out_shape=jax.ShapeDtypeStruct((T, E), x.dtype),
        cost_estimate=cost,
        compiler_params=pltpu.CompilerParams(
            # token tiles are independent (shardable across TCs on v7x);
            # intermediate axis carries the accumulator -> "arbitrary".
            dimension_semantics=("parallel", "arbitrary"),
            vmem_limit_bytes=64 * 1024 * 1024,
        ),
    )(x, w1, w3, w2)


if __name__ == "__main__":
    # Small config consistent with SimConfig semantics (tile-friendly sizes).
    T = 128                 # sequence length (tokens)
    n_embd = 256
    intermediate_size = 512

    key = jax.random.PRNGKey(0)
    kx, k1, k2, k3 = jax.random.split(key, 4)

    x = jax.random.normal(kx, (T, n_embd), jnp.float32)
    # Weights stored pre-transposed (x @ W layouts), matching nn.Linear math.
    w1 = jax.random.normal(k1, (n_embd, intermediate_size), jnp.float32) * 0.02
    w3 = jax.random.normal(k3, (n_embd, intermediate_size), jnp.float32) * 0.02
    w2 = jax.random.normal(k2, (intermediate_size, n_embd), jnp.float32) * 0.02

    # --- silu path (SimConfig default) ---
    out = sim_mlp_forward(x, w1, w3, w2, act_fn="silu", tm=128, ti=256)
    jax.block_until_ready(out)
    ref = (jax.nn.silu(x @ w1) * (x @ w3)) @ w2
    assert out.shape == (T, n_embd)
    assert jnp.allclose(out, ref, atol=1e-4, rtol=1e-4), (
        float(jnp.max(jnp.abs(out - ref))))

    # --- gelu path (gemma configs) ---
    out_g = sim_mlp_forward(x, w1, w3, w2, act_fn="gelu", tm=128, ti=256)
    jax.block_until_ready(out_g)
    ref_g = (jax.nn.gelu(x @ w1, approximate=False) * (x @ w3)) @ w2
    assert jnp.allclose(out_g, ref_g, atol=1e-4, rtol=1e-4), (
        float(jnp.max(jnp.abs(out_g - ref_g))))

    # TODO(synk): SLinear (impl_sym_pch_as_slinear=True quantized down-proj)
    # has no clean Pallas equivalent here; the plain nn.Linear w2 path is used.
    print("KERNEL_OK")
</pallas_src>

<mosaic_0001>
module attributes {stable_mosaic.version = 11 : i64} {
  func.func @_sim_mlp_kernel(%arg0: i32, %arg1: i32, %arg2: memref<128x256xf32, #tpu.memory_space<vmem>>, %arg3: memref<256x256xf32, #tpu.memory_space<vmem>>, %arg4: memref<256x256xf32, #tpu.memory_space<vmem>>, %arg5: memref<256x256xf32, #tpu.memory_space<vmem>>, %arg6: memref<128x256xf32, #tpu.memory_space<vmem>>, %arg7: memref<128x256xf32, #tpu.memory_space<vmem>>) attributes {dimension_semantics = [#tpu.dimension_semantics<parallel>, #tpu.dimension_semantics<arbitrary>], iteration_bounds = array<i64: 1, 2>, scalar_prefetch = 0 : i64, scratch_operands = 1 : i64, tpu.core_type = #tpu.core_type<tc>, window_params = [{transform_indices = @transform_0, window_bounds = array<i64: 128, 256>}, {transform_indices = @transform_1, window_bounds = array<i64: 256, 256>}, {transform_indices = @transform_2, window_bounds = array<i64: 256, 256>}, {transform_indices = @transform_3, window_bounds = array<i64: 256, 256>}, {transform_indices = @transform_4, window_bounds = array<i64: 128, 256>}]} {
    %c0_i32 = arith.constant 0 : i32
    %0 = arith.cmpi eq, %arg1, %c0_i32 : i32
    %1 = arith.extui %0 : i1 to i32
    %c0_i32_0 = arith.constant 0 : i32
    %2 = arith.cmpi ne, %1, %c0_i32_0 : i32
    scf.if %2 {
      %cst_16 = arith.constant 0.000000e+00 : f32
      %23 = vector.broadcast %cst_16 : f32 to vector<128x256xf32>
      %c0_17 = arith.constant 0 : index
      %c0_18 = arith.constant 0 : index
      %24 = vector.load %arg7[%c0_17, %c0_18] : memref<128x256xf32, #tpu.memory_space<vmem>>, vector<128x256xf32>
      tpu.vector_store %arg7[%c0_17, %c0_18], %23 {strides = array<i32>} : memref<128x256xf32, #tpu.memory_space<vmem>>, vector<128x256xf32>,
    } else {
    }
    %c0 = arith.constant 0 : index
    %c0_1 = arith.constant 0 : index
    %3 = vector.load %arg2[%c0, %c0_1] : memref<128x256xf32, #tpu.memory_space<vmem>>, vector<128x256xf32>
    %c0_2 = arith.constant 0 : index
    %c0_3 = arith.constant 0 : index
    %4 = vector.load %arg3[%c0_2, %c0_3] : memref<256x256xf32, #tpu.memory_space<vmem>>, vector<256x256xf32>
    %cst = arith.constant dense<0.000000e+00> : vector<128x256xf32>
    %5 = tpu.matmul %3, %4, %cst {dimension_numbers = #tpu.dot_dimension_numbers<[1], [0], [0], [1], [0, 0, 1, 1], [], []>} : vector<128x256xf32>, vector<256x256xf32>, vector<128x256xf32> -> vector<128x256xf32>
    %c0_4 = arith.constant 0 : index
    %c0_5 = arith.constant 0 : index
    %6 = vector.load %arg4[%c0_4, %c0_5] : memref<256x256xf32, #tpu.memory_space<vmem>>, vector<256x256xf32>
    %cst_6 = arith.constant dense<0.000000e+00> : vector<128x256xf32>
    %7 = tpu.matmul %3, %6, %cst_6 {dimension_numbers = #tpu.dot_dimension_numbers<[1], [0], [0], [1], [0, 0, 1, 1], [], []>} : vector<128x256xf32>, vector<256x256xf32>, vector<128x256xf32> -> vector<128x256xf32>
    %8 = arith.negf %5 : vector<128x256xf32>
    %9 = math.exp %8 : vector<128x256xf32>
    %cst_7 = arith.constant 1.000000e+00 : f32
    %10 = vector.broadcast %cst_7 : f32 to vector<128x256xf32>
    %11 = arith.addf %10, %9 : vector<128x256xf32>
    %12 = arith.divf %10, %11 : vector<128x256xf32>
    %13 = arith.mulf %5, %12 : vector<128x256xf32>
    %14 = arith.mulf %13, %7 : vector<128x256xf32>
    %c0_8 = arith.constant 0 : index
    %c0_9 = arith.constant 0 : index
    %15 = vector.load %arg7[%c0_8, %c0_9] : memref<128x256xf32, #tpu.memory_space<vmem>>, vector<128x256xf32>
    %c0_10 = arith.constant 0 : index
    %c0_11 = arith.constant 0 : index
    %16 = vector.load %arg5[%c0_10, %c0_11] : memref<256x256xf32, #tpu.memory_space<vmem>>, vector<256x256xf32>
    %cst_12 = arith.constant dense<0.000000e+00> : vector<128x256xf32>
    %17 = tpu.matmul %14, %16, %cst_12 {dimension_numbers = #tpu.dot_dimension_numbers<[1], [0], [0], [1], [0, 0, 1, 1], [], []>} : vector<128x256xf32>, vector<256x256xf32>, vector<128x256xf32> -> vector<128x256xf32>
    %18 = arith.addf %15, %17 : vector<128x256xf32>
    %c0_13 = arith.constant 0 : index
    %c0_14 = arith.constant 0 : index
    %19 = vector.load %arg7[%c0_13, %c0_14] : memref<128x256xf32, #tpu.memory_space<vmem>>, vector<128x256xf32>
    tpu.vector_store %arg7[%c0_13, %c0_14], %18 {strides = array<i32>} : memref<128x256xf32, #tpu.memory_space<vmem>>, vector<128x256xf32>,
    %c1_i32 = arith.constant 1 : i32
    %20 = arith.cmpi eq, %arg1, %c1_i32 : i32
    %21 = arith.extui %20 : i1 to i32
    %c0_i32_15 = arith.constant 0 : i32
    %22 = arith.cmpi ne, %21, %c0_i32_15 : i32
    scf.if %22 {
      %c0_16 = arith.constant 0 : index
      %c0_17 = arith.constant 0 : index
      %23 = vector.load %arg7[%c0_16, %c0_17] : memref<128x256xf32, #tpu.memory_space<vmem>>, vector<128x256xf32>
      %c0_18 = arith.constant 0 : index
      %c0_19 = arith.constant 0 : index
      %24 = vector.load %arg6[%c0_18, %c0_19] : memref<128x256xf32, #tpu.memory_space<vmem>>, vector<128x256xf32>
      tpu.vector_store %arg6[%c0_18, %c0_19], %23 {strides = array<i32>} : memref<128x256xf32, #tpu.memory_space<vmem>>, vector<128x256xf32>,
    } else {
    }
    return
  }
  func.func @transform_0(%arg0: i32, %arg1: i32) -> (i32, i32) {
    %c0_i32 = arith.constant 0 : i32
    %c0_i32_0 = arith.constant 0 : i32
    return %arg0, %c0_i32 : i32, i32
  }
  func.func @transform_1(%arg0: i32, %arg1: i32) -> (i32, i32) {
    %c0_i32 = arith.constant 0 : i32
    %c0_i32_0 = arith.constant 0 : i32
    return %c0_i32, %arg1 : i32, i32
  }
  func.func @transform_2(%arg0: i32, %arg1: i32) -> (i32, i32) {
    %c0_i32 = arith.constant 0 : i32
    %c0_i32_0 = arith.constant 0 : i32
    return %c0_i32, %arg1 : i32, i32
  }
  func.func @transform_3(%arg0: i32, %arg1: i32) -> (i32, i32) {
    %c0_i32 = arith.constant 0 : i32
    %c0_i32_0 = arith.constant 0 : i32
    return %arg1, %c0_i32 : i32, i32
  }
  func.func @transform_4(%arg0: i32, %arg1: i32) -> (i32, i32) {
    %c0_i32 = arith.constant 0 : i32
    %c0_i32_0 = arith.constant 0 : i32
    return %arg0, %c0_i32 : i32, i32
  }
}

</mosaic_0001>

<llo_original>
// kernel: tpu_custom_call.1
$region0: #{tpu_custom_call.1}
  #allocation0 [shape = 'u32[]', space=smem, size = 0x4, offset = 0x4, fixed_abs, tag = 'smem constant byte address 0x4 - core index']
  #allocation1 [shape = 'u32[144,128]{1,0:T(1,128)}', space=vmem, size = 0x12000, scoped, tag = 'internal scratch']
  #allocation2 [shape = 'f32[128,256]{1,0:T(8,128)}', space=vmem, size = 0x20000, scoped, tag = 'scratch operand']
  %s0 = inlined_call_operand.hbm [shape: f32[128,256], index: 0, kind: input, shape index: {}]
  %s1 = inlined_call_operand.hbm [shape: f32[256,512], index: 1, kind: input, shape index: {}]
  %s2 = inlined_call_operand.hbm [shape: f32[256,512], index: 2, kind: input, shape index: {}]
  %s3 = inlined_call_operand.hbm [shape: f32[512,256], index: 3, kind: input, shape index: {}]
  %s4 = inlined_call_operand.hbm [shape: f32[128,256], index: 4, kind: output, shape index: {}]
  %s5 = sld [smem:[#allocation0]]
  $region73: #{tpu_custom_call.1} parent=0
    _
  %s7 = ssub.s32 1, %s5
  %s8 = scalar_select 0, %s7, %s5
  $region1: #{tpu_custom_call.1} parent=0
    #allocation3 [shape = 'u8[131072]{0}', space=vmem, size = 0x20000, scoped, tag = 'input window, operand 0, single buffered']
    #allocation4 [shape = 's32[2]{0}', space=sflag, size = 0x8, scoped, tag = 'scoped memory for tpu_custom_call.1']
    #allocation5 [shape = 's32[2]{0}', space=sflag, size = 0x8, scoped, tag = 'scoped memory for tpu_custom_call.1']
    #allocation6 [shape = 'u8[524288]{0}', space=vmem, size = 0x80000, scoped, tag = 'input window, operand 1']
    #allocation7 [shape = 's32[2]{0}', space=sflag, size = 0x8, scoped, tag = 'scoped memory for tpu_custom_call.1']
    #allocation8 [shape = 'u8[524288]{0}', space=vmem, size = 0x80000, scoped, tag = 'input window, operand 2']
    #allocation9 [shape = 'u8[524288]{0}', space=vmem, size = 0x80000, scoped, tag = 'input window, operand 3']
    #allocation10 [shape = 's32[2]{0}', space=sflag, size = 0x8, scoped, tag = 'scoped memory for tpu_custom_call.1']
    #allocation11 [shape = 'u8[131072]{0}', space=vmem, size = 0x20000, scoped, tag = 'output window, operand 0, single buffered']
    %9 = vsyncpa [#allocation4], 0
    %10 = vsyncpa [#allocation7], 0
    %s11 = scalar_lea.sflag [#allocation7], 1
    %12 = vsyncpa %s11, 0
    %13 = vsyncpa [#allocation10], 0
    %s14 = scalar_lea.sflag [#allocation10], 1
    %15 = vsyncpa %s14, 0
    %16 = vsyncpa [#allocation5], 0
    loop: start=0, step=1, limit=4
    $region2: #{tpu_custom_call.1} parent=1 // loop_pre_header
      _
    $region3: #{tpu_custom_call.1} parent=1 // loop_header
      %s18 = sphi 0, %s22
      %p19 = scmp.ge.s32.totalorder %s18, 4
      %s25 = sphi 0, %s37
      %s26 = sphi 0, %s33
      %s27 = sphi 0, %s25
      %s28 = sphi 0, %s26
      %s29 = sphi 0, %s27
      %s30 = sphi 0, %s28
      %s40 = sphi 0, %s42
      %s43 = sphi 0, %s40
      %s44 = sphi 0, %s43
      %s60 = sphi 0, %s44
      %s66 = sphi 0, %s68
      %s69 = sphi 0, %s66
      %s70 = sphi 0, %s69
      %s86 = sphi 0, %s70
      %s92 = sphi 0, %s94
      %s95 = sphi 0, %s92
      %s96 = sphi 0, %s95
      %s112 = sphi 0, %s96
      %s118 = sphi 0, %s120
      %s121 = sphi 0, %s118
      %s122 = sphi 0, %s121
      %s138 = sphi 0, %s122
      %s144 = sphi 0, %s146
      %s147 = sphi 0, %s144
      %s148 = sphi 0, %s147
      %s164 = sphi 0, %s148
    $region4: #{tpu_custom_call.1} parent=1 // loop_header_branch
      %21 = sbr.rel (%p19) target = $region8
    $region5: #{tpu_custom_call.1} parent=1 // loop_body
      %s23 = ssub.s32 %s18, 1
      %s24 = ssub.s32 %s18, 2
      %s31 = sadd.s32 1, %s26
      %p32 = scmp.ge.s32.totalorder %s31, 2
      %s33 = scalar_select %p32, 0, %s31
      %s34 = sadd.s32 1, %s25
      %s35 = scalar_select %p32, %s34, %s25
      %p36 = scmp.ge.s32.totalorder %s35, 1
      %s37 = scalar_select %p36, 0, %s35
      %s38 = ssub.s32 %s25, %s37
      %p39 = scmp.eq.s32.totalorder %s38, 0
      %s41 = sadd.s32 %s40, 1
      %s42 = scalar_select %p39, %s40, %s41
      %p45 = pneg %p39
      %p46 = scmp.eq.s32.totalorder %s18, 1
      %p47 = por %p45, %p46
      %p48 = scmp.ne.s32.totalorder %s40, %s43
      %p49 = scmp.eq.s32.totalorder %s18, 0
      %p50 = por %p48, %p49
      %p51 = scmp.ne.s32.totalorder %s40, %s43
      %p52 = scmp.eq.s32.totalorder %s23, 1
      %p53 = por %p51, %p52
      %p54 = scmp.ne.s32.totalorder %s43, %s44
      %p55 = scmp.eq.s32.totalorder %s23, 0
      %p56 = por %p54, %p55
      %p57 = scmp.ne.s32.totalorder %s43, %s44
      %p58 = scmp.eq.s32.totalorder %s24, 1
      %p59 = por %p57, %p58
      %p61 = scmp.ne.s32.totalorder %s44, %s60
      %p62 = scmp.eq.s32.totalorder %s24, 0
      %p63 = por %p61, %p62
      %s64 = ssub.s32 %s26, %s33
      %p65 = scmp.eq.s32.totalorder %s64, 0
      %s67 = sadd.s32 %s66, 1
      %s68 = scalar_select %p65, %s66, %s67
      %p71 = pneg %p65
      %p72 = scmp.eq.s32.totalorder %s18, 1
      %p73 = por %p71, %p72
      %p74 = scmp.ne.s32.totalorder %s66, %s69
      %p75 = scmp.eq.s32.totalorder %s18, 0
      %p76 = por %p74, %p75
      %p77 = scmp.ne.s32.totalorder %s66, %s69
      %p78 = scmp.eq.s32.totalorder %s23, 1
      %p79 = por %p77, %p78
      %p80 = scmp.ne.s32.totalorder %s69, %s70
      %p81 = scmp.eq.s32.totalorder %s23, 0
      %p82 = por %p80, %p81
      %p83 = scmp.ne.s32.totalorder %s69, %s70
      %p84 = scmp.eq.s32.totalorder %s24, 1
      %p85 = por %p83, %p84
      %p87 = scmp.ne.s32.totalorder %s70, %s86
      %p88 = scmp.eq.s32.totalorder %s24, 0
      %p89 = por %p87, %p88
      %s90 = ssub.s32 %s26, %s33
      %p91 = scmp.eq.s32.totalorder %s90, 0
      %s93 = sadd.s32 %s92, 1
      %s94 = scalar_select %p91, %s92, %s93
      %p97 = pneg %p91
      %p98 = scmp.eq.s32.totalorder %s18, 1
      %p99 = por %p97, %p98
      %p100 = scmp.ne.s32.totalorder %s92, %s95
      %p101 = scmp.eq.s32.totalorder %s18, 0
      %p102 = por %p100, %p101
      %p103 = scmp.ne.s32.totalorder %s92, %s95
      %p104 = scmp.eq.s32.totalorder %s23, 1
      %p105 = por %p103, %p104
      %p106 = scmp.ne.s32.totalorder %s95, %s96
      %p107 = scmp.eq.s32.totalorder %s23, 0
      %p108 = por %p106, %p107
      %p109 = scmp.ne.s32.totalorder %s95, %s96
      %p110 = scmp.eq.s32.totalorder %s24, 1
      %p111 = por %p109, %p110
      %p113 = scmp.ne.s32.totalorder %s96, %s112
      %p114 = scmp.eq.s32.totalorder %s24, 0
      %p115 = por %p113, %p114
      %s116 = ssub.s32 %s26, %s33
      %p117 = scmp.eq.s32.totalorder %s116, 0
      %s119 = sadd.s32 %s118, 1
      %s120 = scalar_select %p117, %s118, %s119
      %p123 = pneg %p117
      %p124 = scmp.eq.s32.totalorder %s18, 1
      %p125 = por %p123, %p124
      %p126 = scmp.ne.s32.totalorder %s118, %s121
      %p127 = scmp.eq.s32.totalorder %s18, 0
      %p128 = por %p126, %p127
      %p129 = scmp.ne.s32.totalorder %s118, %s121
      %p130 = scmp.eq.s32.totalorder %s23, 1
      %p131 = por %p129, %p130
      %p132 = scmp.ne.s32.totalorder %s121, %s122
      %p133 = scmp.eq.s32.totalorder %s23, 0
      %p134 = por %p132, %p133
      %p135 = scmp.ne.s32.totalorder %s121, %s122
      %p136 = scmp.eq.s32.totalorder %s24, 1
      %p137 = por %p135, %p136
      %p139 = scmp.ne.s32.totalorder %s122, %s138
      %p140 = scmp.eq.s32.totalorder %s24, 0
      %p141 = por %p139, %p140
      %s142 = ssub.s32 %s25, %s37
      %p143 = scmp.eq.s32.totalorder %s142, 0
      %s145 = sadd.s32 %s144, 1
      %s146 = scalar_select %p143, %s144, %s145
      %p149 = pneg %p143
      %p150 = scmp.eq.s32.totalorder %s18, 1
      %p151 = por %p149, %p150
      %p152 = scmp.ne.s32.totalorder %s144, %s147
      %p153 = scmp.eq.s32.totalorder %s18, 0
      %p154 = por %p152, %p153
      %p155 = scmp.ne.s32.totalorder %s144, %s147
      %p156 = scmp.eq.s32.totalorder %s23, 1
      %p157 = por %p155, %p156
      %p158 = scmp.ne.s32.totalorder %s147, %s148
      %p159 = scmp.eq.s32.totalorder %s23, 0
      %p160 = por %p158, %p159
      %p161 = scmp.ne.s32.totalorder %s147, %s148
      %p162 = scmp.eq.s32.totalorder %s24, 1
      %p163 = por %p161, %p162
      %p165 = scmp.ne.s32.totalorder %s148, %s164
      %p166 = scmp.eq.s32.totalorder %s24, 0
      %p167 = por %p165, %p166
      %p168 = scmp.le.s32.totalorder 1, %s18
      %p169 = scmp.lt.s32.totalorder %s18, 3
      %p170 = pnand %p168, %p169
      %p171 = pneg %p170
      // Predicated region
      $region9: #{tpu_custom_call.1} parent=5 // pred_check
        _
      $region10: #{tpu_custom_call.1} parent=5 // pred_check_branch
        %173 = sbr.rel (%p170) target = $region12
      $region11: #{tpu_custom_call.1} parent=5 // pred_region
        %s174 = ssub.s32 %s18, 1
        // Predicated region
        $region13: #{tpu_custom_call.1} parent=11 // pred_check
          %p175 = pneg %p56
        $region14: #{tpu_custom_call.1} parent=11 // pred_check_branch
          %177 = sbr.rel (%p175) target = $region16
        $region15: #{tpu_custom_call.1} parent=11 // pred_region
          %s178 = smul.u32 16, %s27
          %s180 = ssub.s32 4096, 4096
          %181 = vsyncadd [#allocation4], %s180
          %s182 = smul.addr %s178, 2
          %s183 = smul.addr %s182, 128
          %s184 = scalar_lea.hbm %s0, %s183
          %s185 = sshll.u32 [#allocation3], 4
          %s186 = int_to_ptr.vmem [resolvable:$true] %s185
          %191 = dma.hbm_to_vmem [thread:$0]  %s184, 4096, %s186, [#allocation4], 256, 256, 16
        $region16: #{tpu_custom_call.1} parent=11 // pred_fallthru
          _
      $region12: #{tpu_custom_call.1} parent=5 // pred_fallthru
        _
      %p192 = scmp.lt.s32.totalorder %s18, 2
      // Predicated region
      $region17: #{tpu_custom_call.1} parent=5 // pred_check
        %p193 = pneg %p192
      $region18: #{tpu_custom_call.1} parent=5 // pred_check_branch
        %195 = sbr.rel (%p193) target = $region20
      $region19: #{tpu_custom_call.1} parent=5 // pred_region
        // Predicated region
        $region21: #{tpu_custom_call.1} parent=19 // pred_check
          %p196 = pneg %p76
        $region22: #{tpu_custom_call.1} parent=19 // pred_check_branch
          %198 = sbr.rel (%p196) target = $region24
        $region23: #{tpu_custom_call.1} parent=19 // pred_region
          %s199 = sand.u32 %s18, 1
          %s200 = scalar_lea.sflag [#allocation7], %s199
          %s201 = sand.u32 %s66, 1
          %s202 = smul.addr %s201, 512
          %s203 = scalar_lea.vmem [#allocation6], %s202
          %s204 = smul.u32 2, %s26
          %s206 = ssub.s32 8192, 8192
          %207 = vsyncadd %s200, %s206
          %s208 = smul.addr %s204, 128
          %s209 = scalar_lea.hbm %s1, %s208
          %s210 = sshll.u32 %s203, 4
          %s211 = int_to_ptr.vmem [resolvable:$true] %s210
          %216 = dma.hbm_to_vmem [thread:$0]  %s209, 8192, %s211, %s200, 512, 256, 16
        $region24: #{tpu_custom_call.1} parent=19 // pred_fallthru
          _
        // Predicated region
        $region25: #{tpu_custom_call.1} parent=19 // pred_check
          %p217 = pneg %p102
        $region26: #{tpu_custom_call.1} parent=19 // pred_check_branch
          %219 = sbr.rel (%p217) target = $region28
        $region27: #{tpu_custom_call.1} parent=19 // pred_region
          %s220 = sand.u32 %s18, 1
          %s221 = scalar_lea.sflag [#allocation7], %s220
          %s222 = sand.u32 %s92, 1
          %s223 = smul.addr %s222, 512
          %s224 = scalar_lea.vmem [#allocation8], %s223
          %s225 = smul.u32 2, %s26
          %s227 = ssub.s32 8192, 8192
          %228 = vsyncadd %s221, %s227
          %s229 = smul.addr %s225, 128
          %s230 = scalar_lea.hbm %s2, %s229
          %s231 = sshll.u32 %s224, 4
          %s232 = int_to_ptr.vmem [resolvable:$true] %s231
          %237 = dma.hbm_to_vmem [thread:$0]  %s230, 8192, %s232, %s221, 512, 256, 16
        $region28: #{tpu_custom_call.1} parent=19 // pred_fallthru
          _
        // Predicated region
        $region29: #{tpu_custom_call.1} parent=19 // pred_check
          %p238 = pneg %p128
        $region30: #{tpu_custom_call.1} parent=19 // pred_check_branch
          %240 = sbr.rel (%p238) target = $region32
        $region31: #{tpu_custom_call.1} parent=19 // pred_region
          %s241 = sand.u32 %s118, 1
          %s242 = scalar_lea.sflag [#allocation10], %s241
          %s243 = sand.u32 %s118, 1
          %s244 = smul.addr %s243, 512
          %s245 = scalar_lea.vmem [#allocation9], %s244
          %s246 = smul.u32 32, %s26
          %s248 = ssub.s32 8192, 8192
          %249 = vsyncadd %s242, %s248
          %s250 = smul.addr %s246, 2
          %s251 = smul.addr %s250, 128
          %s252 = scalar_lea.hbm %s3, %s251
          %s253 = sshll.u32 %s245, 4
          %s254 = int_to_ptr.vmem [resolvable:$true] %s253
          %259 = dma.hbm_to_vmem [thread:$0]  %s252, 8192, %s254, %s242, 256, 256, 16
        $region32: #{tpu_custom_call.1} parent=19 // pred_fallthru
          _
      $region20: #{tpu_custom_call.1} parent=5 // pred_fallthru
        _
      %p260 = scmp.le.s32.totalorder 1, %s18
      %p261 = scmp.lt.s32.totalorder %s18, 3
      %p262 = pnand %p260, %p261
      %p263 = pneg %p262
      // Predicated region
      $region33: #{tpu_custom_call.1} parent=5 // pred_check
        _
      $region34: #{tpu_custom_call.1} parent=5 // pred_check_branch
        %265 = sbr.rel (%p262) target = $region36
      $region35: #{tpu_custom_call.1} parent=5 // pred_region
        %s266 = ssub.s32 %s18, 1
        // Predicated region
        $region37: #{tpu_custom_call.1} parent=35 // pred_check
          %p267 = pneg %p56
        $region38: #{tpu_custom_call.1} parent=35 // pred_check_branch
          %269 = sbr.rel (%p267) target = $region40
        $region39: #{tpu_custom_call.1} parent=35 // pred_region
          %270 = dma.done [#allocation4], 4096
        $region40: #{tpu_custom_call.1} parent=35 // pred_fallthru
          _
        %s271 = sand.u32 %s23, 1
        %s272 = scalar_lea.sflag [#allocation7], %s271
        %s273 = sand.u32 %s69, 1
        %s274 = smul.addr %s273, 512
        %s275 = scalar_lea.vmem [#allocation6], %s274
        // Predicated region
        $region41: #{tpu_custom_call.1} parent=35 // pred_check
          %p276 = pneg %p82
        $region42: #{tpu_custom_call.1} parent=35 // pred_check_branch
          %278 = sbr.rel (%p276) target = $region44
        $region43: #{tpu_custom_call.1} parent=35 // pred_region
          %279 = dma.done %s272, 8192
        $region44: #{tpu_custom_call.1} parent=35 // pred_fallthru
          _
        %s280 = sand.u32 %s23, 1
        %s281 = scalar_lea.sflag [#allocation7], %s280
        %s282 = sand.u32 %s95, 1
        %s283 = smul.addr %s282, 512
        %s284 = scalar_lea.vmem [#allocation8], %s283
        // Predicated region
        $region45: #{tpu_custom_call.1} parent=35 // pred_check
          %p285 = pneg %p108
        $region46: #{tpu_custom_call.1} parent=35 // pred_check_branch
          %287 = sbr.rel (%p285) target = $region48
        $region47: #{tpu_custom_call.1} parent=35 // pred_region
          %288 = dma.done %s281, 8192
        $region48: #{tpu_custom_call.1} parent=35 // pred_fallthru
          _
        %s289 = sand.u32 %s121, 1
        %s290 = scalar_lea.sflag [#allocation10], %s289
        %s291 = sand.u32 %s121, 1
        %s292 = smul.addr %s291, 512
        %s293 = scalar_lea.vmem [#allocation9], %s292
        // Predicated region
        $region49: #{tpu_custom_call.1} parent=35 // pred_check
          %p294 = pneg %p134
        $region50: #{tpu_custom_call.1} parent=35 // pred_check_branch
          %296 = sbr.rel (%p294) target = $region52
        $region51: #{tpu_custom_call.1} parent=35 // pred_region
          %297 = dma.done %s290, 8192
        $region52: #{tpu_custom_call.1} parent=35 // pred_fallthru
          _
        %p298 = pneg %p56
        %p299 = pneg %p53
        %s300 = sand.u32 %s23, 1
        %s301 = scalar_lea.sflag [#allocation7], %s300
        %s302 = sand.u32 %s69, 1
        %s303 = smul.addr %s302, 512
        %s304 = scalar_lea.vmem [#allocation6], %s303
        %p305 = pneg %p82
        %p306 = pneg %p79
        %s307 = sand.u32 %s23, 1
        %s308 = scalar_lea.sflag [#allocation7], %s307
        %s309 = sand.u32 %s95, 1
        %s310 = smul.addr %s309, 512
        %s311 = scalar_lea.vmem [#allocation8], %s310
        %p312 = pneg %p108
        %p313 = pneg %p105
        %s314 = sand.u32 %s121, 1
        %s315 = scalar_lea.sflag [#allocation10], %s314
        %s316 = sand.u32 %s121, 1
        %s317 = smul.addr %s316, 512
        %s318 = scalar_lea.vmem [#allocation9], %s317
        %p319 = pneg %p134
        %p320 = pneg %p131
        %p321 = pneg %p160
        %p322 = pneg %p157
        %s323 = smul.u32 16, %s27
        %s324 = smul.u32 2, %s28
        %s325 = smul.u32 2, %s28
        %s326 = smul.u32 32, %s28
        %s327 = smul.u32 16, %s27
        %p328 = scmp.eq.s32.totalorder %s28, 0
        // Predicated region
        $region53: #{tpu_custom_call.1} parent=35 // pred_check
          %p329 = pneg %p328
        $region54: #{tpu_custom_call.1} parent=35 // pred_check_branch
          %331 = sbr.rel (%p329) target = $region56
        $region55: #{tpu_custom_call.1} parent=35 // pred_region
          %332 = vst [vmem:[#allocation2] sm:$0xff] 0.0
          %333 = vst [vmem:[#allocation2 + $0x8] sm:$0xff] 0.0
          %334 = vst [vmem:[#allocation2 + $0x10] sm:$0xff] 0.0
          %335 = vst [vmem:[#allocation2 + $0x18] sm:$0xff] 0.0
          %336 = vst [vmem:[#allocation2 + $0x20] sm:$0xff] 0.0
          %337 = vst [vmem:[#allocation2 + $0x28] sm:$0xff] 0.0
          %338 = vst [vmem:[#allocation2 + $0x30] sm:$0xff] 0.0
          %339 = vst [vmem:[#allocation2 + $0x38] sm:$0xff] 0.0
          %340 = vst [vmem:[#allocation2 + $0x40] sm:$0xff] 0.0
          %341 = vst [vmem:[#allocation2 + $0x48] sm:$0xff] 0.0
          %342 = vst [vmem:[#allocation2 + $0x50] sm:$0xff] 0.0
          %343 = vst [vmem:[#allocation2 + $0x58] sm:$0xff] 0.0
          %344 = vst [vmem:[#allocation2 + $0x60] sm:$0xff] 0.0
          %345 = vst [vmem:[#allocation2 + $0x68] sm:$0xff] 0.0
          %346 = vst [vmem:[#allocation2 + $0x70] sm:$0xff] 0.0
          %347 = vst [vmem:[#allocation2 + $0x78] sm:$0xff] 0.0
          %348 = vst [vmem:[#allocation2 + $0x80] sm:$0xff] 0.0
          %349 = vst [vmem:[#allocation2 + $0x88] sm:$0xff] 0.0
          %350 = vst [vmem:[#allocation2 + $0x90] sm:$0xff] 0.0
          %351 = vst [vmem:[#allocation2 + $0x98] sm:$0xff] 0.0
          %352 = vst [vmem:[#allocation2 + $0xa0] sm:$0xff] 0.0
          %353 = vst [vmem:[#allocation2 + $0xa8] sm:$0xff] 0.0
          %354 = vst [vmem:[#allocation2 + $0xb0] sm:$0xff] 0.0
          %355 = vst [vmem:[#allocation2 + $0xb8] sm:$0xff] 0.0
          %356 = vst [vmem:[#allocation2 + $0xc0] sm:$0xff] 0.0
          %357 = vst [vmem:[#allocation2 + $0xc8] sm:$0xff] 0.0
          %358 = vst [vmem:[#allocation2 + $0xd0] sm:$0xff] 0.0
          %359 = vst [vmem:[#allocation2 + $0xd8] sm:$0xff] 0.0
          %360 = vst [vmem:[#allocation2 + $0xe0] sm:$0xff] 0.0
          %361 = vst [vmem:[#allocation2 + $0xe8] sm:$0xff] 0.0
          %362 = vst [vmem:[#allocation2 + $0xf0] sm:$0xff] 0.0
          %363 = vst [vmem:[#allocation2 + $0xf8] sm:$0xff] 0.0
        $region56: #{tpu_custom_call.1} parent=35 // pred_fallthru
          _
        %v364 = vld [vmem:[#allocation3] sm:$0xff]
        %v365 = vld [vmem:[#allocation3 + $0x8] sm:$0xff]
        %v366 = vld [vmem:[#allocation3 + $0x10] sm:$0xff]
        %v367 = vld [vmem:[#allocation3 + $0x18] sm:$0xff]
        %v368 = vld [vmem:[#allocation3 + $0x20] sm:$0xff]
        %v369 = vld [vmem:[#allocation3 + $0x28] sm:$0xff]
        %v370 = vld [vmem:[#allocation3 + $0x30] sm:$0xff]
        %v371 = vld [vmem:[#allocation3 + $0x38] sm:$0xff]
        %v372 = vld [vmem:[#allocation3 + $0x40] sm:$0xff]
        %v373 = vld [vmem:[#allocation3 + $0x48] sm:$0xff]
        %v374 = vld [vmem:[#allocation3 + $0x50] sm:$0xff]
        %v375 = vld [vmem:[#allocation3 + $0x58] sm:$0xff]
        %v376 = vld [vmem:[#allocation3 + $0x60] sm:$0xff]
        %v377 = vld [vmem:[#allocation3 + $0x68] sm:$0xff]
        %v378 = vld [vmem:[#allocation3 + $0x70] sm:$0xff]
        %v379 = vld [vmem:[#allocation3 + $0x78] sm:$0xff]
        %v380 = vld [vmem:[#allocation3 + $0x80] sm:$0xff]
        %v381 = vld [vmem:[#allocation3 + $0x88] sm:$0xff]
        %v382 = vld [vmem:[#allocation3 + $0x90] sm:$0xff]
        %v383 = vld [vmem:[#allocation3 + $0x98] sm:$0xff]
        %v384 = vld [vmem:[#allocation3 + $0xa0] sm:$0xff]
        %v385 = vld [vmem:[#allocation3 + $0xa8] sm:$0xff]
        %v386 = vld [vmem:[#allocation3 + $0xb0] sm:$0xff]
        %v387 = vld [vmem:[#allocation3 + $0xb8] sm:$0xff]
        %v388 = vld [vmem:[#allocation3 + $0xc0] sm:$0xff]
        %v389 = vld [vmem:[#allocation3 + $0xc8] sm:$0xff]
        %v390 = vld [vmem:[#allocation3 + $0xd0] sm:$0xff]
        %v391 = vld [vmem:[#allocation3 + $0xd8] sm:$0xff]
        %v392 = vld [vmem:[#allocation3 + $0xe0] sm:$0xff]
        %v393 = vld [vmem:[#allocation3 + $0xe8] sm:$0xff]
        %v394 = vld [vmem:[#allocation3 + $0xf0] sm:$0xff]
        %v395 = vld [vmem:[#allocation3 + $0xf8] sm:$0xff]
        %v396 = vld [vmem:[%s275] sm:$0xff]
        %v397 = vld [vmem:[%s275 + $0x8] sm:$0xff]
        %v398 = vld [vmem:[%s275 + $0x10] sm:$0xff]
        %v399 = vld [vmem:[%s275 + $0x18] sm:$0xff]
        %v400 = vld [vmem:[%s275 + $0x20] sm:$0xff]
        %v401 = vld [vmem:[%s275 + $0x28] sm:$0xff]
        %v402 = vld [vmem:[%s275 + $0x30] sm:$0xff]
        %v403 = vld [vmem:[%s275 + $0x38] sm:$0xff]
        %v404 = vld [vmem:[%s275 + $0x40] sm:$0xff]
        %v405 = vld [vmem:[%s275 + $0x48] sm:$0xff]
        %v406 = vld [vmem:[%s275 + $0x50] sm:$0xff]
        %v407 = vld [vmem:[%s275 + $0x58] sm:$0xff]
        %v408 = vld [vmem:[%s275 + $0x60] sm:$0xff]
        %v409 = vld [vmem:[%s275 + $0x68] sm:$0xff]
        %v410 = vld [vmem:[%s275 + $0x70] sm:$0xff]
        %v411 = vld [vmem:[%s275 + $0x78] sm:$0xff]
        %v412 = vld [vmem:[%s275 + $0x80] sm:$0xff]
        %v413 = vld [vmem:[%s275 + $0x88] sm:$0xff]
        %v414 = vld [vmem:[%s275 + $0x90] sm:$0xff]
        %v415 = vld [vmem:[%s275 + $0x98] sm:$0xff]
        %v416 = vld [vmem:[%s275 + $0xa0] sm:$0xff]
        %v417 = vld [vmem:[%s275 + $0xa8] sm:$0xff]
        %v418 = vld [vmem:[%s275 + $0xb0] sm:$0xff]
        %v419 = vld [vmem:[%s275 + $0xb8] sm:$0xff]
        %v420 = vld [vmem:[%s275 + $0xc0] sm:$0xff]
        %v421 = vld [vmem:[%s275 + $0xc8] sm:$0xff]
        %v422 = vld [vmem:[%s275 + $0xd0] sm:$0xff]
        %v423 = vld [vmem:[%s275 + $0xd8] sm:$0xff]
        %v424 = vld [vmem:[%s275 + $0xe0] sm:$0xff]
        %v425 = vld [vmem:[%s275 + $0xe8] sm:$0xff]
        %v426 = vld [vmem:[%s275 + $0xf0] sm:$0xff]
        %v427 = vld [vmem:[%s275 + $0xf8] sm:$0xff]
        %v428 = vld [vmem:[%s275 + $0x100] sm:$0xff]
        %v429 = vld [vmem:[%s275 + $0x108] sm:$0xff]
        %v430 = vld [vmem:[%s275 + $0x110] sm:$0xff]
        %v431 = vld [vmem:[%s275 + $0x118] sm:$0xff]
        %v432 = vld [vmem:[%s275 + $0x120] sm:$0xff]
        %v433 = vld [vmem:[%s275 + $0x128] sm:$0xff]
        %v434 = vld [vmem:[%s275 + $0x130] sm:$0xff]
        %v435 = vld [vmem:[%s275 + $0x138] sm:$0xff]
        %v436 = vld [vmem:[%s275 + $0x140] sm:$0xff]
        %v437 = vld [vmem:[%s275 + $0x148] sm:$0xff]
        %v438 = vld [vmem:[%s275 + $0x150] sm:$0xff]
        %v439 = vld [vmem:[%s275 + $0x158] sm:$0xff]
        %v440 = vld [vmem:[%s275 + $0x160] sm:$0xff]
        %v441 = vld [vmem:[%s275 + $0x168] sm:$0xff]
        %v442 = vld [vmem:[%s275 + $0x170] sm:$0xff]
        %v443 = vld [vmem:[%s275 + $0x178] sm:$0xff]
        %v444 = vld [vmem:[%s275 + $0x180] sm:$0xff]
        %v445 = vld [vmem:[%s275 + $0x188] sm:$0xff]
        %v446 = vld [vmem:[%s275 + $0x190] sm:$0xff]
        %v447 = vld [vmem:[%s275 + $0x198] sm:$0xff]
        %v448 = vld [vmem:[%s275 + $0x1a0] sm:$0xff]
        %v449 = vld [vmem:[%s275 + $0x1a8] sm:$0xff]
        %v450 = vld [vmem:[%s275 + $0x1b0] sm:$0xff]
        %v451 = vld [vmem:[%s275 + $0x1b8] sm:$0xff]
        %v452 = vld [vmem:[%s275 + $0x1c0] sm:$0xff]
        %v453 = vld [vmem:[%s275 + $0x1c8] sm:$0xff]
        %v454 = vld [vmem:[%s275 + $0x1d0] sm:$0xff]
        %v455 = vld [vmem:[%s275 + $0x1d8] sm:$0xff]
        %v456 = vld [vmem:[%s275 + $0x1e0] sm:$0xff]
        %v457 = vld [vmem:[%s275 + $0x1e8] sm:$0xff]
        %v458 = vld [vmem:[%s275 + $0x1f0] sm:$0xff]
        %v459 = vld [vmem:[%s275 + $0x1f8] sm:$0xff]
        %460 = vmatprep.subr.mxu0 %v397
        %461 = vmatpush1.msra.mxu0 %v396
        %462 = vmatprep.subr.mxu0 %v399
        %463 = vmatpush1.msra.mxu0 %v398
        %464 = vmatprep.subr.mxu0 %v401
        %465 = vmatpush1.msra.mxu0 %v400
        %466 = vmatprep.subr.mxu0 %v403
        %467 = vmatpush1.msra.mxu0 %v402
        %468 = vmatprep.subr.mxu0 %v405
        %469 = vmatpush1.msra.mxu0 %v404
        %470 = vmatprep.subr.mxu0 %v407
        %471 = vmatpush1.msra.mxu0 %v406
        %472 = vmatprep.subr.mxu0 %v409
        %473 = vmatpush1.msra.mxu0 %v408
        %474 = vmatprep.subr.mxu0 %v411
        %475 = vmatpush1.msra.mxu0 %v410
        %476 = vmatprep.subr.mxu0 %v413
        %477 = vmatpush1.msra.mxu0 %v412
        %478 = vmatprep.subr.mxu0 %v415
        %479 = vmatpush1.msra.mxu0 %v414
        %480 = vmatprep.subr.mxu0 %v417
        %481 = vmatpush1.msra.mxu0 %v416
        %482 = vmatprep.subr.mxu0 %v419
        %483 = vmatpush1.msra.mxu0 %v418
        %484 = vmatprep.subr.mxu0 %v421
        %485 = vmatpush1.msra.mxu0 %v420
        %486 = vmatprep.subr.mxu0 %v423
        %487 = vmatpush1.msra.mxu0 %v422
        %488 = vmatprep.subr.mxu0 %v425
        %489 = vmatpush1.msra.mxu0 %v424
        %490 = vmatprep.subr.mxu0 %v427
        %491 = vmatpush1.msra.mxu0 %v426
        %492 = vmatprep.subr.mxu0 %v429
        %493 = vmatpush1.msra.mxu0 %v428
        %494 = vmatprep.subr.mxu0 %v431
        %495 = vmatpush1.msra.mxu0 %v430
        %496 = vmatprep.subr.mxu0 %v433
        %497 = vmatpush1.msra.mxu0 %v432
        %498 = vmatprep.subr.mxu0 %v435
        %499 = vmatpush1.msra.mxu0 %v434
        %500 = vmatprep.subr.mxu0 %v437
        %501 = vmatpush1.msra.mxu0 %v436
        %502 = vmatprep.subr.mxu0 %v439
        %503 = vmatpush1.msra.mxu0 %v438
        %504 = vmatprep.subr.mxu0 %v441
        %505 = vmatpush1.msra.mxu0 %v440
        %506 = vmatprep.subr.mxu0 %v443
        %507 = vmatpush1.msra.mxu0 %v442
        %508 = vmatprep.subr.mxu0 %v445
        %509 = vmatpush1.msra.mxu0 %v444
        %510 = vmatprep.subr.mxu0 %v447
        %511 = vmatpush1.msra.mxu0 %v446
        %512 = vmatprep.subr.mxu0 %v449
        %513 = vmatpush1.msra.mxu0 %v448
        %514 = vmatprep.subr.mxu0 %v451
        %515 = vmatpush1.msra.mxu0 %v450
        %516 = vmatprep.subr.mxu0 %v453
        %517 = vmatpush1.msra.mxu0 %v452
        %518 = vmatprep.subr.mxu0 %v455
        %519 = vmatpush1.msra.mxu0 %v454
        %520 = vmatprep.subr.mxu0 %v457
        %521 = vmatpush1.msra.mxu0 %v456
        %522 = vmatprep.subr.mxu0 %v459
        %523 = vmatpush1.msra.mxu0 %v458
        %524 = vmatprep.mubr.f32.mxu0 %v365
        %525 = vmatmul.mubr.f32.gmra.mrb[0].mxu0 %v364
        %v526 = vpop.f32.mrb[0].mxu0
        %v527 = vadd.f32 0.0, %v526
        %v528 = vpop.f32.mrb[0].mxu0
        %v529 = vadd.f32 0.0, %v528
        %530 = vmatprep.mubr.f32.mxu0 %v367
        %531 = vmatmul.mubr.f32.gmra.mrb[0].mxu0 %v366
        %v532 = vpop.f32.mrb[0].mxu0
        %v533 = vadd.f32 0.0, %v532
        %v534 = vpop.f32.mrb[0].mxu0
        %v535 = vadd.f32 0.0, %v534
        %536 = vmatprep.mubr.f32.mxu0 %v369
        %537 = vmatmul.mubr.f32.gmra.mrb[0].mxu0 %v368
        %v538 = vpop.f32.mrb[0].mxu0
        %v539 = vadd.f32 0.0, %v538
        %v540 = vpop.f32.mrb[0].mxu0
        %v541 = vadd.f32 0.0, %v540
        %542 = vmatprep.mubr.f32.mxu0 %v371
        %543 = vmatmul.mubr.f32.gmra.mrb[0].mxu0 %v370
        %v544 = vpop.f32.mrb[0].mxu0
        %v545 = vadd.f32 0.0, %v544
        %v546 = vpop.f32.mrb[0].mxu0
        %v547 = vadd.f32 0.0, %v546
        %548 = vmatprep.mubr.f32.mxu0 %v373
        %549 = vmatmul.mubr.f32.gmra.mrb[0].mxu0 %v372
        %v550 = vpop.f32.mrb[0].mxu0
        %v551 = vadd.f32 0.0, %v550
        %v552 = vpop.f32.mrb[0].mxu0
        %v553 = vadd.f32 0.0, %v552
        %554 = vmatprep.mubr.f32.mxu0 %v375
        %555 = vmatmul.mubr.f32.gmra.mrb[0].mxu0 %v374
        %v556 = vpop.f32.mrb[0].mxu0
        %v557 = vadd.f32 0.0, %v556
        %v558 = vpop.f32.mrb[0].mxu0
        %v559 = vadd.f32 0.0, %v558
        %560 = vmatprep.mubr.f32.mxu0 %v377
        %561 = vmatmul.mubr.f32.gmra.mrb[0].mxu0 %v376
        %v562 = vpop.f32.mrb[0].mxu0
        %v563 = vadd.f32 0.0, %v562
        %v564 = vpop.f32.mrb[0].mxu0
        %v565 = vadd.f32 0.0, %v564
        %566 = vmatprep.mubr.f32.mxu0 %v379
        %567 = vmatmul.mubr.f32.gmra.mrb[0].mxu0 %v378
        %v568 = vpop.f32.mrb[0].mxu0
        %v569 = vadd.f32 0.0, %v568
        %v570 = vpop.f32.mrb[0].mxu0
        %v571 = vadd.f32 0.0, %v570
        %572 = vmatprep.mubr.f32.mxu0 %v381
        %573 = vmatmul.mubr.f32.gmra.mrb[0].mxu0 %v380
        %v574 = vpop.f32.mrb[0].mxu0
        %v575 = vadd.f32 0.0, %v574
        %v576 = vpop.f32.mrb[0].mxu0
        %v577 = vadd.f32 0.0, %v576
        %578 = vmatprep.mubr.f32.mxu0 %v383
        %579 = vmatmul.mubr.f32.gmra.mrb[0].mxu0 %v382
        %v580 = vpop.f32.mrb[0].mxu0
        %v581 = vadd.f32 0.0, %v580
        %v582 = vpop.f32.mrb[0].mxu0
        %v583 = vadd.f32 0.0, %v582
        %584 = vmatprep.mubr.f32.mxu0 %v385
        %585 = vmatmul.mubr.f32.gmra.mrb[0].mxu0 %v384
        %v586 = vpop.f32.mrb[0].mxu0
        %v587 = vadd.f32 0.0, %v586
        %v588 = vpop.f32.mrb[0].mxu0
        %v589 = vadd.f32 0.0, %v588
        %590 = vmatprep.mubr.f32.mxu0 %v387
        %591 = vmatmul.mubr.f32.gmra.mrb[0].mxu0 %v386
        %v592 = vpop.f32.mrb[0].mxu0
        %v593 = vadd.f32 0.0, %v592
        %v594 = vpop.f32.mrb[0].mxu0
        %v595 = vadd.f32 0.0, %v594
        %596 = vmatprep.mubr.f32.mxu0 %v389
        %597 = vmatmul.mubr.f32.gmra.mrb[0].mxu0 %v388
        %v598 = vpop.f32.mrb[0].mxu0
        %v599 = vadd.f32 0.0, %v598
        %v600 = vpop.f32.mrb[0].mxu0
        %v601 = vadd.f32 0.0, %v600
        %602 = vmatprep.mubr.f32.mxu0 %v391
        %603 = vmatmul.mubr.f32.gmra.mrb[0].mxu0 %v390
        %v604 = vpop.f32.mrb[0].mxu0
        %v605 = vadd.f32 0.0, %v604
        %v606 = vpop.f32.mrb[0].mxu0
        %v607 = vadd.f32 0.0, %v606
        %608 = vmatprep.mubr.f32.mxu0 %v393
        %609 = vmatmul.mubr.f32.gmra.mrb[0].mxu0 %v392
        %v610 = vpop.f32.mrb[0].mxu0
        %v611 = vadd.f32 0.0, %v610
        %v612 = vpop.f32.mrb[0].mxu0
        %v613 = vadd.f32 0.0, %v612
        %614 = vmatprep.mubr.f32.mxu0 %v395
        %615 = vmatmul.mubr.f32.gmra.mrb[0].mxu0 %v394
        %v616 = vpop.f32.mrb[0].mxu0
        %v617 = vadd.f32 0.0, %v616
        %v618 = vpop.f32.mrb[0].mxu0
        %v619 = vadd.f32 0.0, %v618
        %620 = vdwg.mxu0
        %v621 = vld [vmem:[%s284] sm:$0xff]
        %v622 = vld [vmem:[%s284 + $0x8] sm:$0xff]
        %v623 = vld [vmem:[%s284 + $0x10] sm:$0xff]
        %v624 = vld [vmem:[%s284 + $0x18] sm:$0xff]
        %v625 = vld [vmem:[%s284 + $0x20] sm:$0xff]
        %v626 = vld [vmem:[%s284 + $0x28] sm:$0xff]
        %v627 = vld [vmem:[%s284 + $0x30] sm:$0xff]
        %v628 = vld [vmem:[%s284 + $0x38] sm:$0xff]
        %v629 = vld [vmem:[%s284 + $0x40] sm:$0xff]
        %v630 = vld [vmem:[%s284 + $0x48] sm:$0xff]
        %v631 = vld [vmem:[%s284 + $0x50] sm:$0xff]
        %v632 = vld [vmem:[%s284 + $0x58] sm:$0xff]
        %v633 = vld [vmem:[%s284 + $0x60] sm:$0xff]
        %v634 = vld [vmem:[%s284 + $0x68] sm:$0xff]
        %v635 = vld [vmem:[%s284 + $0x70] sm:$0xff]
        %v636 = vld [vmem:[%s284 + $0x78] sm:$0xff]
        %v637 = vld [vmem:[%s284 + $0x80] sm:$0xff]
        %v638 = vld [vmem:[%s284 + $0x88] sm:$0xff]
        %v639 = vld [vmem:[%s284 + $0x90] sm:$0xff]
        %v640 = vld [vmem:[%s284 + $0x98] sm:$0xff]
        %v641 = vld [vmem:[%s284 + $0xa0] sm:$0xff]
        %v642 = vld [vmem:[%s284 + $0xa8] sm:$0xff]
        %v643 = vld [vmem:[%s284 + $0xb0] sm:$0xff]
        %v644 = vld [vmem:[%s284 + $0xb8] sm:$0xff]
        %v645 = vld [vmem:[%s284 + $0xc0] sm:$0xff]
        %v646 = vld [vmem:[%s284 + $0xc8] sm:$0xff]
        %v647 = vld [vmem:[%s284 + $0xd0] sm:$0xff]
        %v648 = vld [vmem:[%s284 + $0xd8] sm:$0xff]
        %v649 = vld [vmem:[%s284 + $0xe0] sm:$0xff]
        %v650 = vld [vmem:[%s284 + $0xe8] sm:$0xff]
        %v651 = vld [vmem:[%s284 + $0xf0] sm:$0xff]
        %v652 = vld [vmem:[%s284 + $0xf8] sm:$0xff]
        %v653 = vld [vmem:[%s284 + $0x100] sm:$0xff]
        %v654 = vld [vmem:[%s284 + $0x108] sm:$0xff]
        %v655 = vld [vmem:[%s284 + $0x110] sm:$0xff]
        %v656 = vld [vmem:[%s284 + $0x118] sm:$0xff]
        %v657 = vld [vmem:[%s284 + $0x120] sm:$0xff]
        %v658 = vld [vmem:[%s284 + $0x128] sm:$0xff]
        %v659 = vld [vmem:[%s284 + $0x130] sm:$0xff]
        %v660 = vld [vmem:[%s284 + $0x138] sm:$0xff]
        %v661 = vld [vmem:[%s284 + $0x140] sm:$0xff]
        %v662 = vld [vmem:[%s284 + $0x148] sm:$0xff]
        %v663 = vld [vmem:[%s284 + $0x150] sm:$0xff]
        %v664 = vld [vmem:[%s284 + $0x158] sm:$0xff]
        %v665 = vld [vmem:[%s284 + $0x160] sm:$0xff]
        %v666 = vld [vmem:[%s284 + $0x168] sm:$0xff]
        %v667 = vld [vmem:[%s284 + $0x170] sm:$0xff]
        %v668 = vld [vmem:[%s284 + $0x178] sm:$0xff]
        %v669 = vld [vmem:[%s284 + $0x180] sm:$0xff]
        %v670 = vld [vmem:[%s284 + $0x188] sm:$0xff]
        %v671 = vld [vmem:[%s284 + $0x190] sm:$0xff]
        %v672 = vld [vmem:[%s284 + $0x198] sm:$0xff]
        %v673 = vld [vmem:[%s284 + $0x1a0] sm:$0xff]
        %v674 = vld [vmem:[%s284 + $0x1a8] sm:$0xff]
        %v675 = vld [vmem:[%s284 + $0x1b0] sm:$0xff]
        %v676 = vld [vmem:[%s284 + $0x1b8] sm:$0xff]
        %v677 = vld [vmem:[%s284 + $0x1c0] sm:$0xff]
        %v678 = vld [vmem:[%s284 + $0x1c8] sm:$0xff]
        %v679 = vld [vmem:[%s284 + $0x1d0] sm:$0xff]
        %v680 = vld [vmem:[%s284 + $0x1d8] sm:$0xff]
        %v681 = vld [vmem:[%s284 + $0x1e0] sm:$0xff]
        %v682 = vld [vmem:[%s284 + $0x1e8] sm:$0xff]
        %v683 = vld [vmem:[%s284 + $0x1f0] sm:$0xff]
        %v684 = vld [vmem:[%s284 + $0x1f8] sm:$0xff]
        %685 = vmatprep.subr.mxu0 %v622
        %686 = vmatpush1.msra.mxu0 %v621
        %687 = vmatprep.subr.mxu0 %v624
        %688 = vmatpush1.msra.mxu0 %v623
        %689 = vmatprep.subr.mxu0 %v626
        %690 = vmatpush1.msra.mxu0 %v625
        %691 = vmatprep.subr.mxu0 %v628
        %692 = vmatpush1.msra.mxu0 %v627
        %693 = vmatprep.subr.mxu0 %v630
        %694 = vmatpush1.msra.mxu0 %v629
        %695 = vmatprep.subr.mxu0 %v632
        %696 = vmatpush1.msra.mxu0 %v631
        %697 = vmatprep.subr.mxu0 %v634
        %698 = vmatpush1.msra.mxu0 %v633
        %699 = vmatprep.subr.mxu0 %v636
        %700 = vmatpush1.msra.mxu0 %v635
        %701 = vmatprep.subr.mxu0 %v638
        %702 = vmatpush1.msra.mxu0 %v637
        %703 = vmatprep.subr.mxu0 %v640
        %704 = vmatpush1.msra.mxu0 %v639
        %705 = vmatprep.subr.mxu0 %v642
        %706 = vmatpush1.msra.mxu0 %v641
        %707 = vmatprep.subr.mxu0 %v644
        %708 = vmatpush1.msra.mxu0 %v643
        %709 = vmatprep.subr.mxu0 %v646
        %710 = vmatpush1.msra.mxu0 %v645
        %711 = vmatprep.subr.mxu0 %v648
        %712 = vmatpush1.msra.mxu0 %v647
        %713 = vmatprep.subr.mxu0 %v650
        %714 = vmatpush1.msra.mxu0 %v649
        %715 = vmatprep.subr.mxu0 %v652
        %716 = vmatpush1.msra.mxu0 %v651
        %717 = vmatprep.subr.mxu0 %v654
        %718 = vmatpush1.msra.mxu0 %v653
        %719 = vmatprep.subr.mxu0 %v656
        %720 = vmatpush1.msra.mxu0 %v655
        %721 = vmatprep.subr.mxu0 %v658
        %722 = vmatpush1.msra.mxu0 %v657
        %723 = vmatprep.subr.mxu0 %v660
        %724 = vmatpush1.msra.mxu0 %v659
        %725 = vmatprep.subr.mxu0 %v662
        %726 = vmatpush1.msra.mxu0 %v661
        %727 = vmatprep.subr.mxu0 %v664
        %728 = vmatpush1.msra.mxu0 %v663
        %729 = vmatprep.subr.mxu0 %v666
        %730 = vmatpush1.msra.mxu0 %v665
        %731 = vmatprep.subr.mxu0 %v668
        %732 = vmatpush1.msra.mxu0 %v667
        %733 = vmatprep.subr.mxu0 %v670
        %734 = vmatpush1.msra.mxu0 %v669
        %735 = vmatprep.subr.mxu0 %v672
        %736 = vmatpush1.msra.mxu0 %v671
        %737 = vmatprep.subr.mxu0 %v674
        %738 = vmatpush1.msra.mxu0 %v673
        %739 = vmatprep.subr.mxu0 %v676
        %740 = vmatpush1.msra.mxu0 %v675
        %741 = vmatprep.subr.mxu0 %v678
        %742 = vmatpush1.msra.mxu0 %v677
        %743 = vmatprep.subr.mxu0 %v680
        %744 = vmatpush1.msra.mxu0 %v679
        %745 = vmatprep.subr.mxu0 %v682
        %746 = vmatpush1.msra.mxu0 %v681
        %747 = vmatprep.subr.mxu0 %v684
        %748 = vmatpush1.msra.mxu0 %v683
        %749 = vmatprep.mubr.f32.mxu0 %v365
        %750 = vmatmul.mubr.f32.gmra.mrb[0].mxu0 %v364
        %v751 = vpop.f32.mrb[0].mxu0
        %v752 = vadd.f32 0.0, %v751
        %v753 = vpop.f32.mrb[0].mxu0
        %v754 = vadd.f32 0.0, %v753
        %755 = vmatprep.mubr.f32.mxu0 %v367
        %756 = vmatmul.mubr.f32.gmra.mrb[0].mxu0 %v366
        %v757 = vpop.f32.mrb[0].mxu0
        %v758 = vadd.f32 0.0, %v757
        %v759 = vpop.f32.mrb[0].mxu0
        %v760 = vadd.f32 0.0, %v759
        %761 = vmatprep.mubr.f32.mxu0 %v369
        %762 = vmatmul.mubr.f32.gmra.mrb[0].mxu0 %v368
        %v763 = vpop.f32.mrb[0].mxu0
        %v764 = vadd.f32 0.0, %v763
        %v765 = vpop.f32.mrb[0].mxu0
        %v766 = vadd.f32 0.0, %v765
        %767 = vmatprep.mubr.f32.mxu0 %v371
        %768 = vmatmul.mubr.f32.gmra.mrb[0].mxu0 %v370
        %v769 = vpop.f32.mrb[0].mxu0
        %v770 = vadd.f32 0.0, %v769
        %v771 = vpop.f32.mrb[0].mxu0
        %v772 = vadd.f32 0.0, %v771
        %773 = vmatprep.mubr.f32.mxu0 %v373
        %774 = vmatmul.mubr.f32.gmra.mrb[0].mxu0 %v372
        %v775 = vpop.f32.mrb[0].mxu0
        %v776 = vadd.f32 0.0, %v775
        %v777 = vpop.f32.mrb[0].mxu0
        %v778 = vadd.f32 0.0, %v777
        %779 = vmatprep.mubr.f32.mxu0 %v375
        %780 = vmatmul.mubr.f32.gmra.mrb[0].mxu0 %v374
        %v781 = vpop.f32.mrb[0].mxu0
        %v782 = vadd.f32 0.0, %v781
        %v783 = vpop.f32.mrb[0].mxu0
        %v784 = vadd.f32 0.0, %v783
        %785 = vmatprep.mubr.f32.mxu0 %v377
        %786 = vmatmul.mubr.f32.gmra.mrb[0].mxu0 %v376
        %v787 = vpop.f32.mrb[0].mxu0
        %v788 = vadd.f32 0.0, %v787
        %v789 = vpop.f32.mrb[0].mxu0
        %v790 = vadd.f32 0.0, %v789
        %791 = vmatprep.mubr.f32.mxu0 %v379
        %792 = vmatmul.mubr.f32.gmra.mrb[0].mxu0 %v378
        %v793 = vpop.f32.mrb[0].mxu0
        %v794 = vadd.f32 0.0, %v793
        %v795 = vpop.f32.mrb[0].mxu0
        %v796 = vadd.f32 0.0, %v795
        %797 = vmatprep.mubr.f32.mxu0 %v381
        %798 = vmatmul.mubr.f32.gmra.mrb[0].mxu0 %v380
        %v799 = vpop.f32.mrb[0].mxu0
        %v800 = vadd.f32 0.0, %v799
        %v801 = vpop.f32.mrb[0].mxu0
        %v802 = vadd.f32 0.0, %v801
        %803 = vmatprep.mubr.f32.mxu0 %v383
        %804 = vmatmul.mubr.f32.gmra.mrb[0].mxu0 %v382
        %v805 = vpop.f32.mrb[0].mxu0
        %v806 = vadd.f32 0.0, %v805
        %v807 = vpop.f32.mrb[0].mxu0
        %v808 = vadd.f32 0.0, %v807
        %809 = vmatprep.mubr.f32.mxu0 %v385
        %810 = vmatmul.mubr.f32.gmra.mrb[0].mxu0 %v384
        %v811 = vpop.f32.mrb[0].mxu0
        %v812 = vadd.f32 0.0, %v811
        %v813 = vpop.f32.mrb[0].mxu0
        %v814 = vadd.f32 0.0, %v813
        %815 = vmatprep.mubr.f32.mxu0 %v387
        %816 = vmatmul.mubr.f32.gmra.mrb[0].mxu0 %v386
        %v817 = vpop.f32.mrb[0].mxu0
        %v818 = vadd.f32 0.0, %v817
        %v819 = vpop.f32.mrb[0].mxu0
        %v820 = vadd.f32 0.0, %v819
        %821 = vmatprep.mubr.f32.mxu0 %v389
        %822 = vmatmul.mubr.f32.gmra.mrb[0].mxu0 %v388
        %v823 = vpop.f32.mrb[0].mxu0
        %v824 = vadd.f32 0.0, %v823
        %v825 = vpop.f32.mrb[0].mxu0
        %v826 = vadd.f32 0.0, %v825
        %827 = vmatprep.mubr.f32.mxu0 %v391
        %828 = vmatmul.mubr.f32.gmra.mrb[0].mxu0 %v390
        %v829 = vpop.f32.mrb[0].mxu0
        %v830 = vadd.f32 0.0, %v829
        %v831 = vpop.f32.mrb[0].mxu0
        %v832 = vadd.f32 0.0, %v831
        %833 = vmatprep.mubr.f32.mxu0 %v393
        %834 = vmatmul.mubr.f32.gmra.mrb[0].mxu0 %v392
        %v835 = vpop.f32.mrb[0].mxu0
        %v836 = vadd.f32 0.0, %v835
        %v837 = vpop.f32.mrb[0].mxu0
        %v838 = vadd.f32 0.0, %v837
        %839 = vmatprep.mubr.f32.mxu0 %v395
        %840 = vmatmul.mubr.f32.gmra.mrb[0].mxu0 %v394
        %v841 = vpop.f32.mrb[0].mxu0
        %v842 = vadd.f32 0.0, %v841
        %v843 = vpop.f32.mrb[0].mxu0
        %v844 = vadd.f32 0.0, %v843
        %845 = vdwg.mxu0
        %v846 = vxor.u32 %v527, 2147483648
        %v847 = vxor.u32 %v529, 2147483648
        %v848 = vxor.u32 %v533, 2147483648
        %v849 = vxor.u32 %v535, 2147483648
        %v850 = vxor.u32 %v539, 2147483648
        %v851 = vxor.u32 %v541, 2147483648
        %v852 = vxor.u32 %v545, 2147483648
        %v853 = vxor.u32 %v547, 2147483648
        %v854 = vxor.u32 %v551, 2147483648
        %v855 = vxor.u32 %v553, 2147483648
        %v856 = vxor.u32 %v557, 2147483648
        %v857 = vxor.u32 %v559, 2147483648
        %v858 = vxor.u32 %v563, 2147483648
        %v859 = vxor.u32 %v565, 2147483648
        %v860 = vxor.u32 %v569, 2147483648
        %v861 = vxor.u32 %v571, 2147483648
        %v862 = vxor.u32 %v575, 2147483648
        %v863 = vxor.u32 %v577, 2147483648
        %v864 = vxor.u32 %v581, 2147483648
        %v865 = vxor.u32 %v583, 2147483648
        %v866 = vxor.u32 %v587, 2147483648
        %v867 = vxor.u32 %v589, 2147483648
        %v868 = vxor.u32 %v593, 2147483648
        %v869 = vxor.u32 %v595, 2147483648
        %v870 = vxor.u32 %v599, 2147483648
        %v871 = vxor.u32 %v601, 2147483648
        %v872 = vxor.u32 %v605, 2147483648
        %v873 = vxor.u32 %v607, 2147483648
        %v874 = vxor.u32 %v611, 2147483648
        %v875 = vxor.u32 %v613, 2147483648
        %v876 = vxor.u32 %v617, 2147483648
        %v877 = vxor.u32 %v619, 2147483648
        %v878 = vmul.f32 %v846, 1.442695
        %v879 = vpow.pop %v878
        %v880 = vmul.f32 %v847, 1.442695
        %v881 = vpow.pop %v880
        %v882 = vmul.f32 %v848, 1.442695
        %v883 = vpow.pop %v882
        %v884 = vmul.f32 %v849, 1.442695
        %v885 = vpow.pop %v884
        %v886 = vmul.f32 %v850, 1.442695
        %v887 = vpow.pop %v886
        %v888 = vmul.f32 %v851, 1.442695
        %v889 = vpow.pop %v888
        %v890 = vmul.f32 %v852, 1.442695
        %v891 = vpow.pop %v890
        %v892 = vmul.f32 %v853, 1.442695
        %v893 = vpow.pop %v892
        %v894 = vmul.f32 %v854, 1.442695
        %v895 = vpow.pop %v894
        %v896 = vmul.f32 %v855, 1.442695
        %v897 = vpow.pop %v896
        %v898 = vmul.f32 %v856, 1.442695
        %v899 = vpow.pop %v898
        %v900 = vmul.f32 %v857, 1.442695
        %v901 = vpow.pop %v900
        %v902 = vmul.f32 %v858, 1.442695
        %v903 = vpow.pop %v902
        %v904 = vmul.f32 %v859, 1.442695
        %v905 = vpow.pop %v904
        %v906 = vmul.f32 %v860, 1.442695
        %v907 = vpow.pop %v906
        %v908 = vmul.f32 %v861, 1.442695
        %v909 = vpow.pop %v908
        %v910 = vmul.f32 %v862, 1.442695
        %v911 = vpow.pop %v910
        %v912 = vmul.f32 %v863, 1.442695
        %v913 = vpow.pop %v912
        %v914 = vmul.f32 %v864, 1.442695
        %v915 = vpow.pop %v914
        %v916 = vmul.f32 %v865, 1.442695
        %v917 = vpow.pop %v916
        %v918 = vmul.f32 %v866, 1.442695
        %v919 = vpow.pop %v918
        %v920 = vmul.f32 %v867, 1.442695
        %v921 = vpow.pop %v920
        %v922 = vmul.f32 %v868, 1.442695
        %v923 = vpow.pop %v922
        %v924 = vmul.f32 %v869, 1.442695
        %v925 = vpow.pop %v924
        %v926 = vmul.f32 %v870, 1.442695
        %v927 = vpow.pop %v926
        %v928 = vmul.f32 %v871, 1.442695
        %v929 = vpow.pop %v928
        %v930 = vmul.f32 %v872, 1.442695
        %v931 = vpow.pop %v930
        %v932 = vmul.f32 %v873, 1.442695
        %v933 = vpow.pop %v932
        %v934 = vmul.f32 %v874, 1.442695
        %v935 = vpow.pop %v934
        %v936 = vmul.f32 %v875, 1.442695
        %v937 = vpow.pop %v936
        %v938 = vmul.f32 %v876, 1.442695
        %v939 = vpow.pop %v938
        %v940 = vmul.f32 %v877, 1.442695
        %v941 = vpow.pop %v940
        %v942 = vadd.f32 %v879, 1.0
        %v943 = vadd.f32 %v881, 1.0
        %v944 = vadd.f32 %v883, 1.0
        %v945 = vadd.f32 %v885, 1.0
        %v946 = vadd.f32 %v887, 1.0
        %v947 = vadd.f32 %v889, 1.0
        %v948 = vadd.f32 %v891, 1.0
        %v949 = vadd.f32 %v893, 1.0
        %v950 = vadd.f32 %v895, 1.0
        %v951 = vadd.f32 %v897, 1.0
        %v952 = vadd.f32 %v899, 1.0
        %v953 = vadd.f32 %v901, 1.0
        %v954 = vadd.f32 %v903, 1.0
        %v955 = vadd.f32 %v905, 1.0
        %v956 = vadd.f32 %v907, 1.0
        %v957 = vadd.f32 %v909, 1.0
        %v958 = vadd.f32 %v911, 1.0
        %v959 = vadd.f32 %v913, 1.0
        %v960 = vadd.f32 %v915, 1.0
        %v961 = vadd.f32 %v917, 1.0
        %v962 = vadd.f32 %v919, 1.0
        %v963 = vadd.f32 %v921, 1.0
        %v964 = vadd.f32 %v923, 1.0
        %v965 = vadd.f32 %v925, 1.0
        %v966 = vadd.f32 %v927, 1.0
        %v967 = vadd.f32 %v929, 1.0
        %v968 = vadd.f32 %v931, 1.0
        %v969 = vadd.f32 %v933, 1.0
        %v970 = vadd.f32 %v935, 1.0
        %v971 = vadd.f32 %v937, 1.0
        %v972 = vadd.f32 %v939, 1.0
        %v973 = vadd.f32 %v941, 1.0
        %v974 = vrcp.pop %v942
        %v975 = vmul.f32 1.0, %v974
        %v976 = vrcp.pop %v943
        %v977 = vmul.f32 1.0, %v976
        %v978 = vrcp.pop %v944
        %v979 = vmul.f32 1.0, %v978
        %v980 = vrcp.pop %v945
        %v981 = vmul.f32 1.0, %v980
        %v982 = vrcp.pop %v946
        %v983 = vmul.f32 1.0, %v982
        %v984 = vrcp.pop %v947
        %v985 = vmul.f32 1.0, %v984
        %v986 = vrcp.pop %v948
        %v987 = vmul.f32 1.0, %v986
        %v988 = vrcp.pop %v949
        %v989 = vmul.f32 1.0, %v988
        %v990 = vrcp.pop %v950
        %v991 = vmul.f32 1.0, %v990
        %v992 = vrcp.pop %v951
        %v993 = vmul.f32 1.0, %v992
        %v994 = vrcp.pop %v952
        %v995 = vmul.f32 1.0, %v994
        %v996 = vrcp.pop %v953
        %v997 = vmul.f32 1.0, %v996
        %v998 = vrcp.pop %v954
        %v999 = vmul.f32 1.0, %v998
        %v1000 = vrcp.pop %v955
        %v1001 = vmul.f32 1.0, %v1000
        %v1002 = vrcp.pop %v956
        %v1003 = vmul.f32 1.0, %v1002
        %v1004 = vrcp.pop %v957
        %v1005 = vmul.f32 1.0, %v1004
        %v1006 = vrcp.pop %v958
        %v1007 = vmul.f32 1.0, %v1006
        %v1008 = vrcp.pop %v959
        %v1009 = vmul.f32 1.0, %v1008
        %v1010 = vrcp.pop %v960
        %v1011 = vmul.f32 1.0, %v1010
        %v1012 = vrcp.pop %v961
        %v1013 = vmul.f32 1.0, %v1012
        %v1014 = vrcp.pop %v962
        %v1015 = vmul.f32 1.0, %v1014
        %v1016 = vrcp.pop %v963
        %v1017 = vmul.f32 1.0, %v1016
        %v1018 = vrcp.pop %v964
        %v1019 = vmul.f32 1.0, %v1018
        %v1020 = vrcp.pop %v965
        %v1021 = vmul.f32 1.0, %v1020
        %v1022 = vrcp.pop %v966
        %v1023 = vmul.f32 1.0, %v1022
        %v1024 = vrcp.pop %v967
        %v1025 = vmul.f32 1.0, %v1024
        %v1026 = vrcp.pop %v968
        %v1027 = vmul.f32 1.0, %v1026
        %v1028 = vrcp.pop %v969
        %v1029 = vmul.f32 1.0, %v1028
        %v1030 = vrcp.pop %v970
        %v1031 = vmul.f32 1.0, %v1030
        %v1032 = vrcp.pop %v971
        %v1033 = vmul.f32 1.0, %v1032
        %v1034 = vrcp.pop %v972
        %v1035 = vmul.f32 1.0, %v1034
        %v1036 = vrcp.pop %v973
        %v1037 = vmul.f32 1.0, %v1036
        %v1038 = vmul.f32 %v527, %v975
        %v1039 = vmul.f32 %v529, %v977
        %v1040 = vmul.f32 %v533, %v979
        %v1041 = vmul.f32 %v535, %v981
        %v1042 = vmul.f32 %v539, %v983
        %v1043 = vmul.f32 %v541, %v985
        %v1044 = vmul.f32 %v545, %v987
        %v1045 = vmul.f32 %v547, %v989
        %v1046 = vmul.f32 %v551, %v991
        %v1047 = vmul.f32 %v553, %v993
        %v1048 = vmul.f32 %v557, %v995
        %v1049 = vmul.f32 %v559, %v997
        %v1050 = vmul.f32 %v563, %v999
        %v1051 = vmul.f32 %v565, %v1001
        %v1052 = vmul.f32 %v569, %v1003
        %v1053 = vmul.f32 %v571, %v1005
        %v1054 = vmul.f32 %v575, %v1007
        %v1055 = vmul.f32 %v577, %v1009
        %v1056 = vmul.f32 %v581, %v1011
        %v1057 = vmul.f32 %v583, %v1013
        %v1058 = vmul.f32 %v587, %v1015
        %v1059 = vmul.f32 %v589, %v1017
        %v1060 = vmul.f32 %v593, %v1019
        %v1061 = vmul.f32 %v595, %v1021
        %v1062 = vmul.f32 %v599, %v1023
        %v1063 = vmul.f32 %v601, %v1025
        %v1064 = vmul.f32 %v605, %v1027
        %v1065 = vmul.f32 %v607, %v1029
        %v1066 = vmul.f32 %v611, %v1031
        %v1067 = vmul.f32 %v613, %v1033
        %v1068 = vmul.f32 %v617, %v1035
        %v1069 = vmul.f32 %v619, %v1037
        %v1070 = vmul.f32 %v1038, %v752
        %v1071 = vmul.f32 %v1039, %v754
        %v1072 = vmul.f32 %v1040, %v758
        %v1073 = vmul.f32 %v1041, %v760
        %v1074 = vmul.f32 %v1042, %v764
        %v1075 = vmul.f32 %v1043, %v766
        %v1076 = vmul.f32 %v1044, %v770
        %v1077 = vmul.f32 %v1045, %v772
        %v1078 = vmul.f32 %v1046, %v776
        %v1079 = vmul.f32 %v1047, %v778
        %v1080 = vmul.f32 %v1048, %v782
        %v1081 = vmul.f32 %v1049, %v784
        %v1082 = vmul.f32 %v1050, %v788
        %v1083 = vmul.f32 %v1051, %v790
        %v1084 = vmul.f32 %v1052, %v794
        %v1085 = vmul.f32 %v1053, %v796
        %v1086 = vmul.f32 %v1054, %v800
        %v1087 = vmul.f32 %v1055, %v802
        %v1088 = vmul.f32 %v1056, %v806
        %v1089 = vmul.f32 %v1057, %v808
        %v1090 = vmul.f32 %v1058, %v812
        %v1091 = vmul.f32 %v1059, %v814
        %v1092 = vmul.f32 %v1060, %v818
        %v1093 = vmul.f32 %v1061, %v820
        %v1094 = vmul.f32 %v1062, %v824
        %v1095 = vmul.f32 %v1063, %v826
        %v1096 = vmul.f32 %v1064, %v830
        %v1097 = vmul.f32 %v1065, %v832
        %v1098 = vmul.f32 %v1066, %v836
        %v1099 = vmul.f32 %v1067, %v838
        %v1100 = vmul.f32 %v1068, %v842
        %v1101 = vmul.f32 %v1069, %v844
        %v1102 = vld [vmem:[#allocation2] sm:$0xff]
        %v1103 = vld [vmem:[#allocation2 + $0x8] sm:$0xff]
        %v1104 = vld [vmem:[#allocation2 + $0x10] sm:$0xff]
        %v1105 = vld [vmem:[#allocation2 + $0x18] sm:$0xff]
        %v1106 = vld [vmem:[#allocation2 + $0x20] sm:$0xff]
        %v1107 = vld [vmem:[#allocation2 + $0x28] sm:$0xff]
        %v1108 = vld [vmem:[#allocation2 + $0x30] sm:$0xff]
        %v1109 = vld [vmem:[#allocation2 + $0x38] sm:$0xff]
        %v1110 = vld [vmem:[#allocation2 + $0x40] sm:$0xff]
        %v1111 = vld [vmem:[#allocation2 + $0x48] sm:$0xff]
        %v1112 = vld [vmem:[#allocation2 + $0x50] sm:$0xff]
        %v1113 = vld [vmem:[#allocation2 + $0x58] sm:$0xff]
        %v1114 = vld [vmem:[#allocation2 + $0x60] sm:$0xff]
        %v1115 = vld [vmem:[#allocation2 + $0x68] sm:$0xff]
        %v1116 = vld [vmem:[#allocation2 + $0x70] sm:$0xff]
        %v1117 = vld [vmem:[#allocation2 + $0x78] sm:$0xff]
        %v1118 = vld [vmem:[#allocation2 + $0x80] sm:$0xff]
        %v1119 = vld [vmem:[#allocation2 + $0x88] sm:$0xff]
        %v1120 = vld [vmem:[#allocation2 + $0x90] sm:$0xff]
        %v1121 = vld [vmem:[#allocation2 + $0x98] sm:$0xff]
        %v1122 = vld [vmem:[#allocation2 + $0xa0] sm:$0xff]
        %v1123 = vld [vmem:[#allocation2 + $0xa8] sm:$0xff]
        %v1124 = vld [vmem:[#allocation2 + $0xb0] sm:$0xff]
        %v1125 = vld [vmem:[#allocation2 + $0xb8] sm:$0xff]
        %v1126 = vld [vmem:[#allocation2 + $0xc0] sm:$0xff]
        %v1127 = vld [vmem:[#allocation2 + $0xc8] sm:$0xff]
        %v1128 = vld [vmem:[#allocation2 + $0xd0] sm:$0xff]
        %v1129 = vld [vmem:[#allocation2 + $0xd8] sm:$0xff]
        %v1130 = vld [vmem:[#allocation2 + $0xe0] sm:$0xff]
        %v1131 = vld [vmem:[#allocation2 + $0xe8] sm:$0xff]
        %v1132 = vld [vmem:[#allocation2 + $0xf0] sm:$0xff]
        %v1133 = vld [vmem:[#allocation2 + $0xf8] sm:$0xff]
        %v1134 = vld [vmem:[%s293] sm:$0xff]
        %v1135 = vld [vmem:[%s293 + $0x8] sm:$0xff]
        %v1136 = vld [vmem:[%s293 + $0x10] sm:$0xff]
        %v1137 = vld [vmem:[%s293 + $0x18] sm:$0xff]
        %v1138 = vld [vmem:[%s293 + $0x20] sm:$0xff]
        %v1139 = vld [vmem:[%s293 + $0x28] sm:$0xff]
        %v1140 = vld [vmem:[%s293 + $0x30] sm:$0xff]
        %v1141 = vld [vmem:[%s293 + $0x38] sm:$0xff]
        %v1142 = vld [vmem:[%s293 + $0x40] sm:$0xff]
        %v1143 = vld [vmem:[%s293 + $0x48] sm:$0xff]
        %v1144 = vld [vmem:[%s293 + $0x50] sm:$0xff]
        %v1145 = vld [vmem:[%s293 + $0x58] sm:$0xff]
        %v1146 = vld [vmem:[%s293 + $0x60] sm:$0xff]
        %v1147 = vld [vmem:[%s293 + $0x68] sm:$0xff]
        %v1148 = vld [vmem:[%s293 + $0x70] sm:$0xff]
        %v1149 = vld [vmem:[%s293 + $0x78] sm:$0xff]
        %v1150 = vld [vmem:[%s293 + $0x80] sm:$0xff]
        %v1151 = vld [vmem:[%s293 + $0x88] sm:$0xff]
        %v1152 = vld [vmem:[%s293 + $0x90] sm:$0xff]
        %v1153 = vld [vmem:[%s293 + $0x98] sm:$0xff]
        %v1154 = vld [vmem:[%s293 + $0xa0] sm:$0xff]
        %v1155 = vld [vmem:[%s293 + $0xa8] sm:$0xff]
        %v1156 = vld [vmem:[%s293 + $0xb0] sm:$0xff]
        %v1157 = vld [vmem:[%s293 + $0xb8] sm:$0xff]
        %v1158 = vld [vmem:[%s293 + $0xc0] sm:$0xff]
        %v1159 = vld [vmem:[%s293 + $0xc8] sm:$0xff]
        %v1160 = vld [vmem:[%s293 + $0xd0] sm:$0xff]
        %v1161 = vld [vmem:[%s293 + $0xd8] sm:$0xff]
        %v1162 = vld [vmem:[%s293 + $0xe0] sm:$0xff]
        %v1163 = vld [vmem:[%s293 + $0xe8] sm:$0xff]
        %v1164 = vld [vmem:[%s293 + $0xf0] sm:$0xff]
        %v1165 = vld [vmem:[%s293 + $0xf8] sm:$0xff]
        %v1166 = vld [vmem:[%s293 + $0x100] sm:$0xff]
        %v1167 = vld [vmem:[%s293 + $0x108] sm:$0xff]
        %v1168 = vld [vmem:[%s293 + $0x110] sm:$0xff]
        %v1169 = vld [vmem:[%s293 + $0x118] sm:$0xff]
        %v1170 = vld [vmem:[%s293 + $0x120] sm:$0xff]
        %v1171 = vld [vmem:[%s293 + $0x128] sm:$0xff]
        %v1172 = vld [vmem:[%s293 + $0x130] sm:$0xff]
        %v1173 = vld [vmem:[%s293 + $0x138] sm:$0xff]
        %v1174 = vld [vmem:[%s293 + $0x140] sm:$0xff]
        %v1175 = vld [vmem:[%s293 + $0x148] sm:$0xff]
        %v1176 = vld [vmem:[%s293 + $0x150] sm:$0xff]
        %v1177 = vld [vmem:[%s293 + $0x158] sm:$0xff]
        %v1178 = vld [vmem:[%s293 + $0x160] sm:$0xff]
        %v1179 = vld [vmem:[%s293 + $0x168] sm:$0xff]
        %v1180 = vld [vmem:[%s293 + $0x170] sm:$0xff]
        %v1181 = vld [vmem:[%s293 + $0x178] sm:$0xff]
        %v1182 = vld [vmem:[%s293 + $0x180] sm:$0xff]
        %v1183 = vld [vmem:[%s293 + $0x188] sm:$0xff]
        %v1184 = vld [vmem:[%s293 + $0x190] sm:$0xff]
        %v1185 = vld [vmem:[%s293 + $0x198] sm:$0xff]
        %v1186 = vld [vmem:[%s293 + $0x1a0] sm:$0xff]
        %v1187 = vld [vmem:[%s293 + $0x1a8] sm:$0xff]
        %v1188 = vld [vmem:[%s293 + $0x1b0] sm:$0xff]
        %v1189 = vld [vmem:[%s293 + $0x1b8] sm:$0xff]
        %v1190 = vld [vmem:[%s293 + $0x1c0] sm:$0xff]
        %v1191 = vld [vmem:[%s293 + $0x1c8] sm:$0xff]
        %v1192 = vld [vmem:[%s293 + $0x1d0] sm:$0xff]
        %v1193 = vld [vmem:[%s293 + $0x1d8] sm:$0xff]
        %v1194 = vld [vmem:[%s293 + $0x1e0] sm:$0xff]
        %v1195 = vld [vmem:[%s293 + $0x1e8] sm:$0xff]
        %v1196 = vld [vmem:[%s293 + $0x1f0] sm:$0xff]
        %v1197 = vld [vmem:[%s293 + $0x1f8] sm:$0xff]
        %1198 = vmatprep.subr.mxu0 %v1135
        %1199 = vmatpush1.msra.mxu0 %v1134
        %1200 = vmatprep.subr.mxu0 %v1137
        %1201 = vmatpush1.msra.mxu0 %v1136
        %1202 = vmatprep.subr.mxu0 %v1139
        %1203 = vmatpush1.msra.mxu0 %v1138
        %1204 = vmatprep.subr.mxu0 %v1141
        %1205 = vmatpush1.msra.mxu0 %v1140
        %1206 = vmatprep.subr.mxu0 %v1143
        %1207 = vmatpush1.msra.mxu0 %v1142
        %1208 = vmatprep.subr.mxu0 %v1145
        %1209 = vmatpush1.msra.mxu0 %v1144
        %1210 = vmatprep.subr.mxu0 %v1147
        %1211 = vmatpush1.msra.mxu0 %v1146
        %1212 = vmatprep.subr.mxu0 %v1149
        %1213 = vmatpush1.msra.mxu0 %v1148
        %1214 = vmatprep.subr.mxu0 %v1151
        %1215 = vmatpush1.msra.mxu0 %v1150
        %1216 = vmatprep.subr.mxu0 %v1153
        %1217 = vmatpush1.msra.mxu0 %v1152
        %1218 = vmatprep.subr.mxu0 %v1155
        %1219 = vmatpush1.msra.mxu0 %v1154
        %1220 = vmatprep.subr.mxu0 %v1157
        %1221 = vmatpush1.msra.mxu0 %v1156
        %1222 = vmatprep.subr.mxu0 %v1159
        %1223 = vmatpush1.msra.mxu0 %v1158
        %1224 = vmatprep.subr.mxu0 %v1161
        %1225 = vmatpush1.msra.mxu0 %v1160
        %1226 = vmatprep.subr.mxu0 %v1163
        %1227 = vmatpush1.msra.mxu0 %v1162
        %1228 = vmatprep.subr.mxu0 %v1165
        %1229 = vmatpush1.msra.mxu0 %v1164
        %1230 = vmatprep.subr.mxu0 %v1167
        %1231 = vmatpush1.msra.mxu0 %v1166
        %1232 = vmatprep.subr.mxu0 %v1169
        %1233 = vmatpush1.msra.mxu0 %v1168
        %1234 = vmatprep.subr.mxu0 %v1171
        %1235 = vmatpush1.msra.mxu0 %v1170
        %1236 = vmatprep.subr.mxu0 %v1173
        %1237 = vmatpush1.msra.mxu0 %v1172
        %1238 = vmatprep.subr.mxu0 %v1175
        %1239 = vmatpush1.msra.mxu0 %v1174
        %1240 = vmatprep.subr.mxu0 %v1177
        %1241 = vmatpush1.msra.mxu0 %v1176
        %1242 = vmatprep.subr.mxu0 %v1179
        %1243 = vmatpush1.msra.mxu0 %v1178
        %1244 = vmatprep.subr.mxu0 %v1181
        %1245 = vmatpush1.msra.mxu0 %v1180
        %1246 = vmatprep.subr.mxu0 %v1183
        %1247 = vmatpush1.msra.mxu0 %v1182
        %1248 = vmatprep.subr.mxu0 %v1185
        %1249 = vmatpush1.msra.mxu0 %v1184
        %1250 = vmatprep.subr.mxu0 %v1187
        %1251 = vmatpush1.msra.mxu0 %v1186
        %1252 = vmatprep.subr.mxu0 %v1189
        %1253 = vmatpush1.msra.mxu0 %v1188
        %1254 = vmatprep.subr.mxu0 %v1191
        %1255 = vmatpush1.msra.mxu0 %v1190
        %1256 = vmatprep.subr.mxu0 %v1193
        %1257 = vmatpush1.msra.mxu0 %v1192
        %1258 = vmatprep.subr.mxu0 %v1195
        %1259 = vmatpush1.msra.mxu0 %v1194
        %1260 = vmatprep.subr.mxu0 %v1197
        %1261 = vmatpush1.msra.mxu0 %v1196
        %1262 = vmatprep.mubr.f32.mxu0 %v1071
        %1263 = vmatmul.mubr.f32.gmra.mrb[0].mxu0 %v1070
        %v1264 = vpop.f32.mrb[0].mxu0
        %v1265 = vadd.f32 0.0, %v1264
        %v1266 = vpop.f32.mrb[0].mxu0
        %v1267 = vadd.f32 0.0, %v1266
        %1268 = vmatprep.mubr.f32.mxu0 %v1073
        %1269 = vmatmul.mubr.f32.gmra.mrb[0].mxu0 %v1072
        %v1270 = vpop.f32.mrb[0].mxu0
        %v1271 = vadd.f32 0.0, %v1270
        %v1272 = vpop.f32.mrb[0].mxu0
        %v1273 = vadd.f32 0.0, %v1272
        %1274 = vmatprep.mubr.f32.mxu0 %v1075
        %1275 = vmatmul.mubr.f32.gmra.mrb[0].mxu0 %v1074
        %v1276 = vpop.f32.mrb[0].mxu0
        %v1277 = vadd.f32 0.0, %v1276
        %v1278 = vpop.f32.mrb[0].mxu0
        %v1279 = vadd.f32 0.0, %v1278
        %1280 = vmatprep.mubr.f32.mxu0 %v1077
        %1281 = vmatmul.mubr.f32.gmra.mrb[0].mxu0 %v1076
        %v1282 = vpop.f32.mrb[0].mxu0
        %v1283 = vadd.f32 0.0, %v1282
        %v1284 = vpop.f32.mrb[0].mxu0
        %v1285 = vadd.f32 0.0, %v1284
        %1286 = vmatprep.mubr.f32.mxu0 %v1079
        %1287 = vmatmul.mubr.f32.gmra.mrb[0].mxu0 %v1078
        %v1288 = vpop.f32.mrb[0].mxu0
        %v1289 = vadd.f32 0.0, %v1288
        %v1290 = vpop.f32.mrb[0].mxu0
        %v1291 = vadd.f32 0.0, %v1290
        %1292 = vmatprep.mubr.f32.mxu0 %v1081
        %1293 = vmatmul.mubr.f32.gmra.mrb[0].mxu0 %v1080
        %v1294 = vpop.f32.mrb[0].mxu0
        %v1295 = vadd.f32 0.0, %v1294
        %v1296 = vpop.f32.mrb[0].mxu0
        %v1297 = vadd.f32 0.0, %v1296
        %1298 = vmatprep.mubr.f32.mxu0 %v1083
        %1299 = vmatmul.mubr.f32.gmra.mrb[0].mxu0 %v1082
        %v1300 = vpop.f32.mrb[0].mxu0
        %v1301 = vadd.f32 0.0, %v1300
        %v1302 = vpop.f32.mrb[0].mxu0
        %v1303 = vadd.f32 0.0, %v1302
        %1304 = vmatprep.mubr.f32.mxu0 %v1085
        %1305 = vmatmul.mubr.f32.gmra.mrb[0].mxu0 %v1084
        %v1306 = vpop.f32.mrb[0].mxu0
        %v1307 = vadd.f32 0.0, %v1306
        %v1308 = vpop.f32.mrb[0].mxu0
        %v1309 = vadd.f32 0.0, %v1308
        %1310 = vmatprep.mubr.f32.mxu0 %v1087
        %1311 = vmatmul.mubr.f32.gmra.mrb[0].mxu0 %v1086
        %v1312 = vpop.f32.mrb[0].mxu0
        %v1313 = vadd.f32 0.0, %v1312
        %v1314 = vpop.f32.mrb[0].mxu0
        %v1315 = vadd.f32 0.0, %v1314
        %1316 = vmatprep.mubr.f32.mxu0 %v1089
        %1317 = vmatmul.mubr.f32.gmra.mrb[0].mxu0 %v1088
        %v1318 = vpop.f32.mrb[0].mxu0
        %v1319 = vadd.f32 0.0, %v1318
        %v1320 = vpop.f32.mrb[0].mxu0
        %v1321 = vadd.f32 0.0, %v1320
        %1322 = vmatprep.mubr.f32.mxu0 %v1091
        %1323 = vmatmul.mubr.f32.gmra.mrb[0].mxu0 %v1090
        %v1324 = vpop.f32.mrb[0].mxu0
        %v1325 = vadd.f32 0.0, %v1324
        %v1326 = vpop.f32.mrb[0].mxu0
        %v1327 = vadd.f32 0.0, %v1326
        %1328 = vmatprep.mubr.f32.mxu0 %v1093
        %1329 = vmatmul.mubr.f32.gmra.mrb[0].mxu0 %v1092
        %v1330 = vpop.f32.mrb[0].mxu0
        %v1331 = vadd.f32 0.0, %v1330
        %v1332 = vpop.f32.mrb[0].mxu0
        %v1333 = vadd.f32 0.0, %v1332
        %1334 = vmatprep.mubr.f32.mxu0 %v1095
        %1335 = vmatmul.mubr.f32.gmra.mrb[0].mxu0 %v1094
        %v1336 = vpop.f32.mrb[0].mxu0
        %v1337 = vadd.f32 0.0, %v1336
        %v1338 = vpop.f32.mrb[0].mxu0
        %v1339 = vadd.f32 0.0, %v1338
        %1340 = vmatprep.mubr.f32.mxu0 %v1097
        %1341 = vmatmul.mubr.f32.gmra.mrb[0].mxu0 %v1096
        %v1342 = vpop.f32.mrb[0].mxu0
        %v1343 = vadd.f32 0.0, %v1342
        %v1344 = vpop.f32.mrb[0].mxu0
        %v1345 = vadd.f32 0.0, %v1344
        %1346 = vmatprep.mubr.f32.mxu0 %v1099
        %1347 = vmatmul.mubr.f32.gmra.mrb[0].mxu0 %v1098
        %v1348 = vpop.f32.mrb[0].mxu0
        %v1349 = vadd.f32 0.0, %v1348
        %v1350 = vpop.f32.mrb[0].mxu0
        %v1351 = vadd.f32 0.0, %v1350
        %1352 = vmatprep.mubr.f32.mxu0 %v1101
        %1353 = vmatmul.mubr.f32.gmra.mrb[0].mxu0 %v1100
        %v1354 = vpop.f32.mrb[0].mxu0
        %v1355 = vadd.f32 0.0, %v1354
        %v1356 = vpop.f32.mrb[0].mxu0
        %v1357 = vadd.f32 0.0, %v1356
        %1358 = vdwg.mxu0
        %v1359 = vadd.f32 %v1102, %v1265
        %v1360 = vadd.f32 %v1103, %v1267
        %v1361 = vadd.f32 %v1104, %v1271
        %v1362 = vadd.f32 %v1105, %v1273
        %v1363 = vadd.f32 %v1106, %v1277
        %v1364 = vadd.f32 %v1107, %v1279
        %v1365 = vadd.f32 %v1108, %v1283
        %v1366 = vadd.f32 %v1109, %v1285
        %v1367 = vadd.f32 %v1110, %v1289
        %v1368 = vadd.f32 %v1111, %v1291
        %v1369 = vadd.f32 %v1112, %v1295
        %v1370 = vadd.f32 %v1113, %v1297
        %v1371 = vadd.f32 %v1114, %v1301
        %v1372 = vadd.f32 %v1115, %v1303
        %v1373 = vadd.f32 %v1116, %v1307
        %v1374 = vadd.f32 %v1117, %v1309
        %v1375 = vadd.f32 %v1118, %v1313
        %v1376 = vadd.f32 %v1119, %v1315
        %v1377 = vadd.f32 %v1120, %v1319
        %v1378 = vadd.f32 %v1121, %v1321
        %v1379 = vadd.f32 %v1122, %v1325
        %v1380 = vadd.f32 %v1123, %v1327
        %v1381 = vadd.f32 %v1124, %v1331
        %v1382 = vadd.f32 %v1125, %v1333
        %v1383 = vadd.f32 %v1126, %v1337
        %v1384 = vadd.f32 %v1127, %v1339
        %v1385 = vadd.f32 %v1128, %v1343
        %v1386 = vadd.f32 %v1129, %v1345
        %v1387 = vadd.f32 %v1130, %v1349
        %v1388 = vadd.f32 %v1131, %v1351
        %v1389 = vadd.f32 %v1132, %v1355
        %v1390 = vadd.f32 %v1133, %v1357
        %1391 = vst [vmem:[#allocation2] sm:$0xff] %v1359
        %1392 = vst [vmem:[#allocation2 + $0x8] sm:$0xff] %v1360
        %1393 = vst [vmem:[#allocation2 + $0x10] sm:$0xff] %v1361
        %1394 = vst [vmem:[#allocation2 + $0x18] sm:$0xff] %v1362
        %1395 = vst [vmem:[#allocation2 + $0x20] sm:$0xff] %v1363
        %1396 = vst [vmem:[#allocation2 + $0x28] sm:$0xff] %v1364
        %1397 = vst [vmem:[#allocation2 + $0x30] sm:$0xff] %v1365
        %1398 = vst [vmem:[#allocation2 + $0x38] sm:$0xff] %v1366
        %1399 = vst [vmem:[#allocation2 + $0x40] sm:$0xff] %v1367
        %1400 = vst [vmem:[#allocation2 + $0x48] sm:$0xff] %v1368
        %1401 = vst [vmem:[#allocation2 + $0x50] sm:$0xff] %v1369
        %1402 = vst [vmem:[#allocation2 + $0x58] sm:$0xff] %v1370
        %1403 = vst [vmem:[#allocation2 + $0x60] sm:$0xff] %v1371
        %1404 = vst [vmem:[#allocation2 + $0x68] sm:$0xff] %v1372
        %1405 = vst [vmem:[#allocation2 + $0x70] sm:$0xff] %v1373
        %1406 = vst [vmem:[#allocation2 + $0x78] sm:$0xff] %v1374
        %1407 = vst [vmem:[#allocation2 + $0x80] sm:$0xff] %v1375
        %1408 = vst [vmem:[#allocation2 + $0x88] sm:$0xff] %v1376
        %1409 = vst [vmem:[#allocation2 + $0x90] sm:$0xff] %v1377
        %1410 = vst [vmem:[#allocation2 + $0x98] sm:$0xff] %v1378
        %1411 = vst [vmem:[#allocation2 + $0xa0] sm:$0xff] %v1379
        %1412 = vst [vmem:[#allocation2 + $0xa8] sm:$0xff] %v1380
        %1413 = vst [vmem:[#allocation2 + $0xb0] sm:$0xff] %v1381
        %1414 = vst [vmem:[#allocation2 + $0xb8] sm:$0xff] %v1382
        %1415 = vst [vmem:[#allocation2 + $0xc0] sm:$0xff] %v1383
        %1416 = vst [vmem:[#allocation2 + $0xc8] sm:$0xff] %v1384
        %1417 = vst [vmem:[#allocation2 + $0xd0] sm:$0xff] %v1385
        %1418 = vst [vmem:[#allocation2 + $0xd8] sm:$0xff] %v1386
        %1419 = vst [vmem:[#allocation2 + $0xe0] sm:$0xff] %v1387
        %1420 = vst [vmem:[#allocation2 + $0xe8] sm:$0xff] %v1388
        %1421 = vst [vmem:[#allocation2 + $0xf0] sm:$0xff] %v1389
        %1422 = vst [vmem:[#allocation2 + $0xf8] sm:$0xff] %v1390
        %p1423 = scmp.eq.s32.totalorder %s28, 1
        // Predicated region
        $region57: #{tpu_custom_call.1} parent=35 // pred_check
          %p1424 = pneg %p1423
        $region58: #{tpu_custom_call.1} parent=35 // pred_check_branch
          %1426 = sbr.rel (%p1424) target = $region60
        $region59: #{tpu_custom_call.1} parent=35 // pred_region
          %v1427 = vld [vmem:[#allocation2] sm:$0xff]
          %v1428 = vld [vmem:[#allocation2 + $0x8] sm:$0xff]
          %v1429 = vld [vmem:[#allocation2 + $0x10] sm:$0xff]
          %v1430 = vld [vmem:[#allocation2 + $0x18] sm:$0xff]
          %v1431 = vld [vmem:[#allocation2 + $0x20] sm:$0xff]
          %v1432 = vld [vmem:[#allocation2 + $0x28] sm:$0xff]
          %v1433 = vld [vmem:[#allocation2 + $0x30] sm:$0xff]
          %v1434 = vld [vmem:[#allocation2 + $0x38] sm:$0xff]
          %v1435 = vld [vmem:[#allocation2 + $0x40] sm:$0xff]
          %v1436 = vld [vmem:[#allocation2 + $0x48] sm:$0xff]
          %v1437 = vld [vmem:[#allocation2 + $0x50] sm:$0xff]
          %v1438 = vld [vmem:[#allocation2 + $0x58] sm:$0xff]
          %v1439 = vld [vmem:[#allocation2 + $0x60] sm:$0xff]
          %v1440 = vld [vmem:[#allocation2 + $0x68] sm:$0xff]
          %v1441 = vld [vmem:[#allocation2 + $0x70] sm:$0xff]
          %v1442 = vld [vmem:[#allocation2 + $0x78] sm:$0xff]
          %v1443 = vld [vmem:[#allocation2 + $0x80] sm:$0xff]
          %v1444 = vld [vmem:[#allocation2 + $0x88] sm:$0xff]
          %v1445 = vld [vmem:[#allocation2 + $0x90] sm:$0xff]
          %v1446 = vld [vmem:[#allocation2 + $0x98] sm:$0xff]
          %v1447 = vld [vmem:[#allocation2 + $0xa0] sm:$0xff]
          %v1448 = vld [vmem:[#allocation2 + $0xa8] sm:$0xff]
          %v1449 = vld [vmem:[#allocation2 + $0xb0] sm:$0xff]
          %v1450 = vld [vmem:[#allocation2 + $0xb8] sm:$0xff]
          %v1451 = vld [vmem:[#allocation2 + $0xc0] sm:$0xff]
          %v1452 = vld [vmem:[#allocation2 + $0xc8] sm:$0xff]
          %v1453 = vld [vmem:[#allocation2 + $0xd0] sm:$0xff]
          %v1454 = vld [vmem:[#allocation2 + $0xd8] sm:$0xff]
          %v1455 = vld [vmem:[#allocation2 + $0xe0] sm:$0xff]
          %v1456 = vld [vmem:[#allocation2 + $0xe8] sm:$0xff]
          %v1457 = vld [vmem:[#allocation2 + $0xf0] sm:$0xff]
          %v1458 = vld [vmem:[#allocation2 + $0xf8] sm:$0xff]
          %1459 = vst [vmem:[#allocation11] sm:$0xff] %v1427
          %1460 = vst [vmem:[#allocation11 + $0x8] sm:$0xff] %v1428
          %1461 = vst [vmem:[#allocation11 + $0x10] sm:$0xff] %v1429
          %1462 = vst [vmem:[#allocation11 + $0x18] sm:$0xff] %v1430
          %1463 = vst [vmem:[#allocation11 + $0x20] sm:$0xff] %v1431
          %1464 = vst [vmem:[#allocation11 + $0x28] sm:$0xff] %v1432
          %1465 = vst [vmem:[#allocation11 + $0x30] sm:$0xff] %v1433
          %1466 = vst [vmem:[#allocation11 + $0x38] sm:$0xff] %v1434
          %1467 = vst [vmem:[#allocation11 + $0x40] sm:$0xff] %v1435
          %1468 = vst [vmem:[#allocation11 + $0x48] sm:$0xff] %v1436
          %1469 = vst [vmem:[#allocation11 + $0x50] sm:$0xff] %v1437
          %1470 = vst [vmem:[#allocation11 + $0x58] sm:$0xff] %v1438
          %1471 = vst [vmem:[#allocation11 + $0x60] sm:$0xff] %v1439
          %1472 = vst [vmem:[#allocation11 + $0x68] sm:$0xff] %v1440
          %1473 = vst [vmem:[#allocation11 + $0x70] sm:$0xff] %v1441
          %1474 = vst [vmem:[#allocation11 + $0x78] sm:$0xff] %v1442
          %1475 = vst [vmem:[#allocation11 + $0x80] sm:$0xff] %v1443
          %1476 = vst [vmem:[#allocation11 + $0x88] sm:$0xff] %v1444
          %1477 = vst [vmem:[#allocation11 + $0x90] sm:$0xff] %v1445
          %1478 = vst [vmem:[#allocation11 + $0x98] sm:$0xff] %v1446
          %1479 = vst [vmem:[#allocation11 + $0xa0] sm:$0xff] %v1447
          %1480 = vst [vmem:[#allocation11 + $0xa8] sm:$0xff] %v1448
          %1481 = vst [vmem:[#allocation11 + $0xb0] sm:$0xff] %v1449
          %1482 = vst [vmem:[#allocation11 + $0xb8] sm:$0xff] %v1450
          %1483 = vst [vmem:[#allocation11 + $0xc0] sm:$0xff] %v1451
          %1484 = vst [vmem:[#allocation11 + $0xc8] sm:$0xff] %v1452
          %1485 = vst [vmem:[#allocation11 + $0xd0] sm:$0xff] %v1453
          %1486 = vst [vmem:[#allocation11 + $0xd8] sm:$0xff] %v1454
          %1487 = vst [vmem:[#allocation11 + $0xe0] sm:$0xff] %v1455
          %1488 = vst [vmem:[#allocation11 + $0xe8] sm:$0xff] %v1456
          %1489 = vst [vmem:[#allocation11 + $0xf0] sm:$0xff] %v1457
          %1490 = vst [vmem:[#allocation11 + $0xf8] sm:$0xff] %v1458
        $region60: #{tpu_custom_call.1} parent=35 // pred_fallthru
          _
        // Predicated region
        $region61: #{tpu_custom_call.1} parent=35 // pred_check
          %p1491 = pneg %p157
        $region62: #{tpu_custom_call.1} parent=35 // pred_check_branch
          %1493 = sbr.rel (%p1491) target = $region64
        $region63: #{tpu_custom_call.1} parent=35 // pred_region
          %s1494 = smul.u32 16, %s27
          %s1496 = ssub.s32 4096, 4096
          %1497 = vsyncadd [#allocation5], %s1496
          %s1498 = smul.addr %s1494, 2
          %s1499 = smul.addr %s1498, 128
          %s1500 = scalar_lea.hbm %s4, %s1499
          %s1501 = sshll.u32 [#allocation11], 4
          %s1502 = int_to_ptr.vmem [resolvable:$true] %s1501
          %1507 = dma.vmem_to_hbm [thread:$0]  %s1502, 4096, %s1500, [#allocation5], 256, 256, 16
        $region64: #{tpu_custom_call.1} parent=35 // pred_fallthru
          _
        // Predicated region
        $region65: #{tpu_custom_call.1} parent=35 // pred_check
          %p1508 = pneg %p157
        $region66: #{tpu_custom_call.1} parent=35 // pred_check_branch
          %1510 = sbr.rel (%p1508) target = $region68
        $region67: #{tpu_custom_call.1} parent=35 // pred_region
          %1511 = dma.done [#allocation5], 4096
        $region68: #{tpu_custom_call.1} parent=35 // pred_fallthru
          _
      $region36: #{tpu_custom_call.1} parent=5 // pred_fallthru
        _
      %p1512 = scmp.le.s32.totalorder 2, %s18
      // Predicated region
      $region69: #{tpu_custom_call.1} parent=5 // pred_check
        %p1513 = pneg %p1512
      $region70: #{tpu_custom_call.1} parent=5 // pred_check_branch
        %1515 = sbr.rel (%p1513) target = $region72
      $region71: #{tpu_custom_call.1} parent=5 // pred_region
        %s1516 = ssub.s32 %s18, 2
      $region72: #{tpu_custom_call.1} parent=5 // pred_fallthru
        _
    $region6: #{tpu_custom_call.1} parent=1 // loop_footer
      %s22 = sadd.s32 1, %s18
    $region7: #{tpu_custom_call.1} parent=1 // loop_footer_branch
      %17 = sbr.rel target = $region3
    $region8: #{tpu_custom_call.1} parent=1 // loop_exit
      _
    %1517 = vsyncpa [#allocation4], 1
    %s1518 = scalar_lea.sflag [#allocation4], 1
    %1519 = vsyncpa %s1518, 1
    %1520 = vsyncpa [#allocation7], 1
    %s1521 = scalar_lea.sflag [#allocation7], 1
    %1522 = vsyncpa %s1521, 1
    %1523 = vsyncpa [#allocation10], 1
    %s1524 = scalar_lea.sflag [#allocation10], 1
    %1525 = vsyncpa %s1524, 1
    %1526 = vsyncpa [#allocation5], 1
    %s1527 = scalar_lea.sflag [#allocation5], 1
    %1528 = vsyncpa %s1527, 1

</llo_original>
